<compile_context>
chip_gen: v7x
topology: tpu7x:2x2x1
jax: 0.10.0
libtpu: 0.0.40
codegen_flags: <defaults>
</compile_context>

<pallas_src>
import jax
import jax.numpy as jnp
from jax import lax
from jax.experimental import pallas as pl
from jax.experimental.pallas import tpu as pltpu


# --------------------------------------------------------------------------
# Pallas kernel: merged bi-LSTM recurrence + attention pooling + fc + logsoftmax
# --------------------------------------------------------------------------
def _net_lstm_kernel(embcat_ref, mask_ref, wih_ref, bih_ref, whh_ref,
                     wattf_ref, wattb_ref, bfc_ref,
                     out_ref,
                     xg_scr, hf_scr, hb_scr):
    TB, H2 = mask_ref.shape            # (T*B, 2H) merged recurrence mask
    H = H2 // 2
    B, TAG = out_ref.shape
    T = TB // B
    f32 = jnp.float32

    # ---- hoisted input projection: ONE MXU matmul for all timesteps & both
    #      directions (bias folded in; bwd half already time-reversed) -------
    xg_scr[...] = (jnp.dot(embcat_ref[...], wih_ref[...],
                           preferred_element_type=f32)
                   + bih_ref[...])                       # (T*B, 8H)

    whh = whh_ref[...]                 # (2H, 8H) block-diag; register-resident
    m_all = mask_ref[...]              # (T*B, 2H); broadcasts done in wrapper

    h = jnp.zeros((B, H2), f32)        # [h_fwd | h_bwd]
    c = jnp.zeros((B, H2), f32)        # [c_fwd | c_bwd]

    # ---- merged + fully-unrolled recurrence: fwd at t1, bwd at T-1-t1 ------
    # (masked carry update == pack_padded_sequence semantics for right-padded
    #  sentences; padded positions get zero attention weight in the tail, so
    #  the stored hidden values there are irrelevant)
    for t1 in range(T):
        t2 = T - 1 - t1

        x = xg_scr[pl.ds(t1 * B, B), :]                      # (B, 8H)
        gates = x + jnp.dot(h, whh, preferred_element_type=f32)   # (B, 8H)

        sg = jax.nn.sigmoid(gates)     # one full-width EUP pass
        th = jnp.tanh(gates)           # one full-width EUP pass
        i = sg[:, 0 * H2:1 * H2]       # gate blocks are [fwd | bwd] wide slabs
        f = sg[:, 1 * H2:2 * H2]
        g = th[:, 2 * H2:3 * H2]
        o = sg[:, 3 * H2:4 * H2]

        c_new = f * c + i * g
        h_new = o * jnp.tanh(c_new)

        hf_scr[pl.ds(t1 * B, B), :] = h_new[:, :H]           # fwd hidden @ t1
        hb_scr[pl.ds(t2 * B, B), :] = h_new[:, H:]           # bwd hidden @ t2

        keep = m_all[t1 * B:(t1 + 1) * B, :] > 0.5           # (B, 2H)
        h = jnp.where(keep, h_new, h)                        # exact select
        c = jnp.where(keep, c_new, c)

    # ---- attention pooling + fc + log_softmax, batched over the flat slab --
    # fc is linear, so fc(sum_t a_t * h_t) == sum_t a_t * fc(h_t); the fc row
    # is packed as the last column of wattx_{f,b}.
    lp = (jnp.dot(hf_scr[...], wattf_ref[...], preferred_element_type=f32)
          + jnp.dot(hb_scr[...], wattb_ref[...], preferred_element_type=f32))
    # lp: (T*B, TAG+1)

    att_mask = m_all[:, 0:1]                                 # mask(t, b), (T*B,1)
    logits = lp[:, :TAG] + (att_mask - 1.0) * 1e30           # masked_fill
    proj = lp[:, TAG:TAG + 1]                                # fc(h_t), (T*B, 1)

    # softmax-over-time reduction (rows are t-major: row = t*B + b)
    mx = logits[0:B, :]
    for t in range(1, T):
        mx = jnp.maximum(mx, logits[t * B:(t + 1) * B, :])
    den = jnp.zeros((B, TAG), f32)
    num = jnp.zeros((B, TAG), f32)
    for t in range(T):
        e_t = jnp.exp(logits[t * B:(t + 1) * B, :] - mx)     # exactly 0 at pad
        den = den + e_t
        num = num + e_t * proj[t * B:(t + 1) * B, :]

    fc_out = num / den + bfc_ref[...]                        # (B, TAG)

    # log_softmax over tags
    m2 = jnp.max(fc_out, axis=1, keepdims=True)
    lse = m2 + jnp.log(jnp.sum(jnp.exp(fc_out - m2), axis=1, keepdims=True))
    out_ref[...] = fc_out - lse                              # single full store


# --------------------------------------------------------------------------
# One-time weight packing (kept off the per-forward path)
# --------------------------------------------------------------------------
def pack_params(p):
    f32 = jnp.float32
    H = p["whh_f"].shape[1]
    E = p["wih_f"].shape[1]
    G = 4 * H

    wih_f_t = p["wih_f"].T.astype(f32)          # (E, 4H), torch gate order i,f,g,o
    wih_b_t = p["wih_b"].T.astype(f32)
    whh_f_t = p["whh_f"].T.astype(f32)          # (H, 4H)
    whh_b_t = p["whh_b"].T.astype(f32)
    bf = (p["bih_f"] + p["bhh_f"]).astype(f32)
    bb = (p["bih_b"] + p["bhh_b"]).astype(f32)

    # Block-diagonal packing with per-gate direction interleave:
    # columns of gate k occupy [2kH : 2kH+H] (fwd) and [2kH+H : 2(k+1)H] (bwd).
    wih_blk = jnp.zeros((2 * E, 2 * G), f32)    # (2E, 8H)
    whh_blk = jnp.zeros((2 * H, 2 * G), f32)    # (2H, 8H)
    bih_blk = jnp.zeros((1, 2 * G), f32)        # (1, 8H)
    for k in range(4):
        cf = slice(2 * k * H, 2 * k * H + H)
        cb = slice(2 * k * H + H, 2 * (k + 1) * H)
        src = slice(k * H, (k + 1) * H)
        wih_blk = wih_blk.at[:E, cf].set(wih_f_t[:, src])
        wih_blk = wih_blk.at[E:, cb].set(wih_b_t[:, src])
        whh_blk = whh_blk.at[:H, cf].set(whh_f_t[:, src])
        whh_blk = whh_blk.at[H:, cb].set(whh_b_t[:, src])
        bih_blk = bih_blk.at[0, cf].set(bf[src])
        bih_blk = bih_blk.at[0, cb].set(bb[src])

    # attention + fc folded: last column of wattx_{f,b} is the fc row.
    wattx_f = jnp.concatenate([p["att_w"][:, :H].T, p["fc_w"][:, :H].T],
                              axis=1).astype(f32)            # (H, TAG+1)
    wattx_b = jnp.concatenate([p["att_w"][:, H:].T, p["fc_w"][:, H:].T],
                              axis=1).astype(f32)            # (H, TAG+1)
    bfc = p["fc_b"].reshape(1, 1).astype(f32)                # (1, 1)

    return dict(emb=p["emb_w"].astype(f32), wih=wih_blk, bih=bih_blk,
                whh=whh_blk, wattx_f=wattx_f, wattx_b=wattx_b, bfc=bfc)


# --------------------------------------------------------------------------
# Wrapper: embedding gather + layout plumbing + pallas_call
# --------------------------------------------------------------------------
def net_lstm_forward(s, packed, padding_idx):
    B, T = s.shape
    E = packed["wih"].shape[0] // 2
    H = packed["whh"].shape[0] // 2
    TAG = packed["wattx_f"].shape[1] - 1
    f32 = jnp.float32

    # glue in plain JAX: embedding lookup (gather), time-reversal for the bwd
    # direction, and the hoisted mask lane-broadcasts.
    emb = packed["emb"][s]                                   # (B, T, E)
    # TODO(synk): nn.Dropout(0.5) is identity at inference; not applied.
    emb_tbe = jnp.transpose(emb, (1, 0, 2)).astype(f32)      # (T, B, E)
    embcat = jnp.concatenate([emb_tbe, emb_tbe[::-1]],
                             axis=-1).reshape(T * B, 2 * E)  # (T*B, 2E)

    mask_tb = jnp.transpose((s != padding_idx).astype(f32))  # (T, B)
    mask_f = jnp.broadcast_to(mask_tb[:, :, None], (T, B, H))
    mask_b = jnp.broadcast_to(mask_tb[::-1][:, :, None], (T, B, H))
    mask_rec = jnp.concatenate([mask_f, mask_b],
                               axis=-1).reshape(T * B, 2 * H)  # (T*B, 2H)

    ins = (embcat, mask_rec, packed["wih"], packed["bih"], packed["whh"],
           packed["wattx_f"], packed["wattx_b"], packed["bfc"])

    def full_spec(shape):
        n = len(shape)
        return pl.BlockSpec(shape, lambda i, n=n: (0,) * n)

    grid_spec = pltpu.PrefetchScalarGridSpec(
        num_scalar_prefetch=0,
        grid=(1,),
        in_specs=[full_spec(x.shape) for x in ins],
        out_specs=full_spec((B, TAG)),
        scratch_shapes=[pltpu.VMEM((T * B, 8 * H), f32),   # merged gate slab
                        pltpu.VMEM((T * B, H), f32),       # fwd hidden states
                        pltpu.VMEM((T * B, H), f32)],      # bwd hidden states
    )
    return pl.pallas_call(
        _net_lstm_kernel,
        out_shape=jax.ShapeDtypeStruct((B, TAG), f32),
        grid_spec=grid_spec,
        compiler_params=pltpu.CompilerParams(
            dimension_semantics=("arbitrary",)),
    )(*ins)


# --------------------------------------------------------------------------
# Pure-JAX reference (correctness check)
# --------------------------------------------------------------------------
def reference_forward(s, p, padding_idx):
    emb = p["emb_w"][s]                                    # (B, T, E)
    mask = (s != padding_idx)                              # (B, T)
    B, T, _ = emb.shape
    H = p["whh_f"].shape[1]

    def run_dir(wih, whh, bih, bhh, reverse):
        def step(carry, xm):
            h, c = carry
            x, m = xm
            gates = x @ wih.T + h @ whh.T + bih + bhh
            i, f, g, o = jnp.split(gates, 4, axis=-1)
            i = jax.nn.sigmoid(i); f = jax.nn.sigmoid(f)
            g = jnp.tanh(g); o = jax.nn.sigmoid(o)
            c_new = f * c + i * g
            h_new = o * jnp.tanh(c_new)
            mm = m[:, None]
            return (mm * h_new + (1 - mm) * h,
                    mm * c_new + (1 - mm) * c), mm * h_new
        xs = (jnp.transpose(emb, (1, 0, 2)),
              jnp.transpose(mask).astype(jnp.float32))
        init = (jnp.zeros((B, H)), jnp.zeros((B, H)))
        _, outs = lax.scan(step, init, xs, reverse=reverse)
        return jnp.transpose(outs, (1, 0, 2))              # (B, T, H)

    hf = run_dir(p["wih_f"], p["whh_f"], p["bih_f"], p["bhh_f"], False)
    hb = run_dir(p["wih_b"], p["whh_b"], p["bih_b"], p["bhh_b"], True)
    outs = jnp.concatenate([hf, hb], axis=-1)              # (B, T, 2H)

    att = jnp.einsum("bth,kh->bkt", outs, p["att_w"])      # (B, TAG, T)
    att = jnp.where(mask[:, None, :], att, -1e30)
    att = jax.nn.softmax(att, axis=-1)
    ctx = att @ outs                                       # (B, TAG, 2H)
    logits = jnp.squeeze(ctx @ p["fc_w"].T + p["fc_b"], -1)  # (B, TAG)
    return jax.nn.log_softmax(logits, axis=1)


# --------------------------------------------------------------------------
# Deterministic parameter init (shapes from Net_lstm.__init__)
# --------------------------------------------------------------------------
def init_params(key, vocab, E, H, TAG):
    ks = jax.random.split(key, 12)
    def n(k, shape, scale=0.1):
        return jax.random.normal(k, shape, dtype=jnp.float32) * scale
    return dict(
        emb_w=n(ks[0], (vocab, E)),
        wih_f=n(ks[1], (4 * H, E)), whh_f=n(ks[2], (4 * H, H)),
        bih_f=n(ks[3], (4 * H,)), bhh_f=n(ks[4], (4 * H,)),
        wih_b=n(ks[5], (4 * H, E)), whh_b=n(ks[6], (4 * H, H)),
        bih_b=n(ks[7], (4 * H,)), bhh_b=n(ks[8], (4 * H,)),
        fc_w=n(ks[9], (1, 2 * H)), fc_b=n(ks[10], (1,)),
        att_w=n(ks[11], (TAG, 2 * H)),
    )


if __name__ == "__main__":
    VOCAB, E, H, TAG, PAD = 50, 16, 32, 5, 0
    B, T = 2, 8

    key = jax.random.PRNGKey(0)
    k_tok, k_par = jax.random.split(key)
    params = init_params(k_par, VOCAB, E, H, TAG)
    packed = pack_params(params)        # weight packing done once, off the hot path

    # batch of sentences: row 0 full length, row 1 right-padded with PAD
    s = jax.random.randint(k_tok, (B, T), 1, VOCAB, dtype=jnp.int32)
    s = s.at[1, 5:].set(PAD)

    out = net_lstm_forward(s, packed, PAD)
    out = jax.block_until_ready(out)

    ref = reference_forward(s, params, PAD)
    assert out.shape == (B, TAG)
    assert bool(jnp.all(jnp.isfinite(out)))
    err = float(jnp.max(jnp.abs(out - ref)))
    assert err < 1e-3, err

    print("KERNEL_OK")
</pallas_src>

<mosaic_0001>
module attributes {stable_mosaic.version = 11 : i64} {
  func.func @_net_lstm_kernel(%arg0: i32, %arg1: memref<16x32xf32, #tpu.memory_space<vmem>>, %arg2: memref<16x64xf32, #tpu.memory_space<vmem>>, %arg3: memref<32x256xf32, #tpu.memory_space<vmem>>, %arg4: memref<1x256xf32, #tpu.memory_space<vmem>>, %arg5: memref<64x256xf32, #tpu.memory_space<vmem>>, %arg6: memref<32x6xf32, #tpu.memory_space<vmem>>, %arg7: memref<32x6xf32, #tpu.memory_space<vmem>>, %arg8: memref<1x1xf32, #tpu.memory_space<vmem>>, %arg9: memref<2x5xf32, #tpu.memory_space<vmem>>, %arg10: memref<16x256xf32, #tpu.memory_space<vmem>>, %arg11: memref<16x32xf32, #tpu.memory_space<vmem>>, %arg12: memref<16x32xf32, #tpu.memory_space<vmem>>) attributes {dimension_semantics = [#tpu.dimension_semantics<arbitrary>], iteration_bounds = array<i64: 1>, scalar_prefetch = 0 : i64, scratch_operands = 3 : i64, tpu.core_type = #tpu.core_type<tc>, window_params = [{pipeline_mode = #tpu.pipeline_mode<synchronous>, transform_indices = @transform_0, window_bounds = array<i64: 16, 32>}, {pipeline_mode = #tpu.pipeline_mode<synchronous>, transform_indices = @transform_1, window_bounds = array<i64: 16, 64>}, {pipeline_mode = #tpu.pipeline_mode<synchronous>, transform_indices = @transform_2, window_bounds = array<i64: 32, 256>}, {pipeline_mode = #tpu.pipeline_mode<synchronous>, transform_indices = @transform_3, window_bounds = array<i64: 1, 256>}, {pipeline_mode = #tpu.pipeline_mode<synchronous>, transform_indices = @transform_4, window_bounds = array<i64: 64, 256>}, {pipeline_mode = #tpu.pipeline_mode<synchronous>, transform_indices = @transform_5, window_bounds = array<i64: 32, 6>}, {pipeline_mode = #tpu.pipeline_mode<synchronous>, transform_indices = @transform_6, window_bounds = array<i64: 32, 6>}, {pipeline_mode = #tpu.pipeline_mode<synchronous>, transform_indices = @transform_7, window_bounds = array<i64: 1, 1>}, {pipeline_mode = #tpu.pipeline_mode<synchronous>, transform_indices = @transform_8, window_bounds = array<i64: 2, 5>}]} {
    %c0 = arith.constant 0 : index
    %c0_0 = arith.constant 0 : index
    %0 = vector.load %arg1[%c0, %c0_0] : memref<16x32xf32, #tpu.memory_space<vmem>>, vector<16x32xf32>
    %c0_1 = arith.constant 0 : index
    %c0_2 = arith.constant 0 : index
    %1 = vector.load %arg3[%c0_1, %c0_2] : memref<32x256xf32, #tpu.memory_space<vmem>>, vector<32x256xf32>
    %cst = arith.constant dense<0.000000e+00> : vector<16x256xf32>
    %2 = tpu.matmul %0, %1, %cst {dimension_numbers = #tpu.dot_dimension_numbers<[1], [0], [0], [1], [0, 0, 1, 1], [], []>} : vector<16x32xf32>, vector<32x256xf32>, vector<16x256xf32> -> vector<16x256xf32>
    %c0_3 = arith.constant 0 : index
    %c0_4 = arith.constant 0 : index
    %3 = vector.load %arg4[%c0_3, %c0_4] : memref<1x256xf32, #tpu.memory_space<vmem>>, vector<1x256xf32>
    %4 = vector.broadcast %3 : vector<1x256xf32> to vector<16x256xf32>
    %5 = arith.addf %2, %4 : vector<16x256xf32>
    %c0_5 = arith.constant 0 : index
    %c0_6 = arith.constant 0 : index
    %6 = vector.load %arg10[%c0_5, %c0_6] : memref<16x256xf32, #tpu.memory_space<vmem>>, vector<16x256xf32>
    tpu.vector_store %arg10[%c0_5, %c0_6], %5 {strides = array<i32>} : memref<16x256xf32, #tpu.memory_space<vmem>>, vector<16x256xf32>,
    %c0_7 = arith.constant 0 : index
    %c0_8 = arith.constant 0 : index
    %7 = vector.load %arg5[%c0_7, %c0_8] : memref<64x256xf32, #tpu.memory_space<vmem>>, vector<64x256xf32>
    %c0_9 = arith.constant 0 : index
    %c0_10 = arith.constant 0 : index
    %8 = vector.load %arg2[%c0_9, %c0_10] : memref<16x64xf32, #tpu.memory_space<vmem>>, vector<16x64xf32>
    %cst_11 = arith.constant 0.000000e+00 : f32
    %9 = vector.broadcast %cst_11 : f32 to vector<2x64xf32>
    %cst_12 = arith.constant 0.000000e+00 : f32
    %10 = vector.broadcast %cst_12 : f32 to vector<2x64xf32>
    %c0_13 = arith.constant 0 : index
    %c0_14 = arith.constant 0 : index
    %11 = vector.load %arg10[%c0_13, %c0_14] : memref<16x256xf32, #tpu.memory_space<vmem>>, vector<2x256xf32>
    %cst_15 = arith.constant dense<0.000000e+00> : vector<2x256xf32>
    %12 = tpu.matmul %9, %7, %cst_15 {dimension_numbers = #tpu.dot_dimension_numbers<[1], [0], [0], [1], [0, 0, 1, 1], [], []>} : vector<2x64xf32>, vector<64x256xf32>, vector<2x256xf32> -> vector<2x256xf32>
    %13 = arith.addf %11, %12 : vector<2x256xf32>
    %14 = arith.negf %13 : vector<2x256xf32>
    %15 = math.exp %14 : vector<2x256xf32>
    %cst_16 = arith.constant 1.000000e+00 : f32
    %16 = vector.broadcast %cst_16 : f32 to vector<2x256xf32>
    %17 = arith.addf %16, %15 : vector<2x256xf32>
    %18 = arith.divf %16, %17 : vector<2x256xf32>
    %19 = math.tanh %13 : vector<2x256xf32>
    %20 = vector.extract_strided_slice %18 {offsets = [0, 0], sizes = [2, 64], strides = [1, 1]} : vector<2x256xf32> to vector<2x64xf32>
    %21 = vector.extract_strided_slice %18 {offsets = [0, 64], sizes = [2, 64], strides = [1, 1]} : vector<2x256xf32> to vector<2x64xf32>
    %22 = vector.extract_strided_slice %19 {offsets = [0, 128], sizes = [2, 64], strides = [1, 1]} : vector<2x256xf32> to vector<2x64xf32>
    %23 = vector.extract_strided_slice %18 {offsets = [0, 192], sizes = [2, 64], strides = [1, 1]} : vector<2x256xf32> to vector<2x64xf32>
    %24 = arith.mulf %21, %10 : vector<2x64xf32>
    %25 = arith.mulf %20, %22 : vector<2x64xf32>
    %26 = arith.addf %24, %25 : vector<2x64xf32>
    %27 = math.tanh %26 : vector<2x64xf32>
    %28 = arith.mulf %23, %27 : vector<2x64xf32>
    %29 = vector.extract_strided_slice %28 {offsets = [0, 0], sizes = [2, 32], strides = [1, 1]} : vector<2x64xf32> to vector<2x32xf32>
    %c0_17 = arith.constant 0 : index
    %c0_18 = arith.constant 0 : index
    %30 = vector.load %arg11[%c0_17, %c0_18] : memref<16x32xf32, #tpu.memory_space<vmem>>, vector<2x32xf32>
    tpu.vector_store %arg11[%c0_17, %c0_18], %29 {strides = array<i32>} : memref<16x32xf32, #tpu.memory_space<vmem>>, vector<2x32xf32>,
    %31 = vector.extract_strided_slice %28 {offsets = [0, 32], sizes = [2, 32], strides = [1, 1]} : vector<2x64xf32> to vector<2x32xf32>
    %c14 = arith.constant 14 : index
    %c0_19 = arith.constant 0 : index
    %32 = vector.load %arg12[%c14, %c0_19] : memref<16x32xf32, #tpu.memory_space<vmem>>, vector<2x32xf32>
    tpu.vector_store %arg12[%c14, %c0_19], %31 {strides = array<i32>} : memref<16x32xf32, #tpu.memory_space<vmem>>, vector<2x32xf32>,
    %33 = vector.extract_strided_slice %8 {offsets = [0, 0], sizes = [2, 64], strides = [1, 1]} : vector<16x64xf32> to vector<2x64xf32>
    %cst_20 = arith.constant 5.000000e-01 : f32
    %34 = vector.broadcast %cst_20 : f32 to vector<2x64xf32>
    %35 = arith.cmpf ogt, %33, %34 : vector<2x64xf32>
    %36 = arith.select %35, %28, %9 : vector<2x64xi1>, vector<2x64xf32>
    %37 = arith.select %35, %26, %10 : vector<2x64xi1>, vector<2x64xf32>
    %c2 = arith.constant 2 : index
    %c0_21 = arith.constant 0 : index
    %38 = vector.load %arg10[%c2, %c0_21] : memref<16x256xf32, #tpu.memory_space<vmem>>, vector<2x256xf32>
    %cst_22 = arith.constant dense<0.000000e+00> : vector<2x256xf32>
    %39 = tpu.matmul %36, %7, %cst_22 {dimension_numbers = #tpu.dot_dimension_numbers<[1], [0], [0], [1], [0, 0, 1, 1], [], []>} : vector<2x64xf32>, vector<64x256xf32>, vector<2x256xf32> -> vector<2x256xf32>
    %40 = arith.addf %38, %39 : vector<2x256xf32>
    %41 = arith.negf %40 : vector<2x256xf32>
    %42 = math.exp %41 : vector<2x256xf32>
    %cst_23 = arith.constant 1.000000e+00 : f32
    %43 = vector.broadcast %cst_23 : f32 to vector<2x256xf32>
    %44 = arith.addf %43, %42 : vector<2x256xf32>
    %45 = arith.divf %43, %44 : vector<2x256xf32>
    %46 = math.tanh %40 : vector<2x256xf32>
    %47 = vector.extract_strided_slice %45 {offsets = [0, 0], sizes = [2, 64], strides = [1, 1]} : vector<2x256xf32> to vector<2x64xf32>
    %48 = vector.extract_strided_slice %45 {offsets = [0, 64], sizes = [2, 64], strides = [1, 1]} : vector<2x256xf32> to vector<2x64xf32>
    %49 = vector.extract_strided_slice %46 {offsets = [0, 128], sizes = [2, 64], strides = [1, 1]} : vector<2x256xf32> to vector<2x64xf32>
    %50 = vector.extract_strided_slice %45 {offsets = [0, 192], sizes = [2, 64], strides = [1, 1]} : vector<2x256xf32> to vector<2x64xf32>
    %51 = arith.mulf %48, %37 : vector<2x64xf32>
    %52 = arith.mulf %47, %49 : vector<2x64xf32>
    %53 = arith.addf %51, %52 : vector<2x64xf32>
    %54 = math.tanh %53 : vector<2x64xf32>
    %55 = arith.mulf %50, %54 : vector<2x64xf32>
    %56 = vector.extract_strided_slice %55 {offsets = [0, 0], sizes = [2, 32], strides = [1, 1]} : vector<2x64xf32> to vector<2x32xf32>
    %c2_24 = arith.constant 2 : index
    %c0_25 = arith.constant 0 : index
    %57 = vector.load %arg11[%c2_24, %c0_25] : memref<16x32xf32, #tpu.memory_space<vmem>>, vector<2x32xf32>
    tpu.vector_store %arg11[%c2_24, %c0_25], %56 {strides = array<i32>} : memref<16x32xf32, #tpu.memory_space<vmem>>, vector<2x32xf32>,
    %58 = vector.extract_strided_slice %55 {offsets = [0, 32], sizes = [2, 32], strides = [1, 1]} : vector<2x64xf32> to vector<2x32xf32>
    %c12 = arith.constant 12 : index
    %c0_26 = arith.constant 0 : index
    %59 = vector.load %arg12[%c12, %c0_26] : memref<16x32xf32, #tpu.memory_space<vmem>>, vector<2x32xf32>
    tpu.vector_store %arg12[%c12, %c0_26], %58 {strides = array<i32>} : memref<16x32xf32, #tpu.memory_space<vmem>>, vector<2x32xf32>,
    %60 = vector.extract_strided_slice %8 {offsets = [2, 0], sizes = [2, 64], strides = [1, 1]} : vector<16x64xf32> to vector<2x64xf32>
    %cst_27 = arith.constant 5.000000e-01 : f32
    %61 = vector.broadcast %cst_27 : f32 to vector<2x64xf32>
    %62 = arith.cmpf ogt, %60, %61 : vector<2x64xf32>
    %63 = arith.select %62, %55, %36 : vector<2x64xi1>, vector<2x64xf32>
    %64 = arith.select %62, %53, %37 : vector<2x64xi1>, vector<2x64xf32>
    %c4 = arith.constant 4 : index
    %c0_28 = arith.constant 0 : index
    %65 = vector.load %arg10[%c4, %c0_28] : memref<16x256xf32, #tpu.memory_space<vmem>>, vector<2x256xf32>
    %cst_29 = arith.constant dense<0.000000e+00> : vector<2x256xf32>
    %66 = tpu.matmul %63, %7, %cst_29 {dimension_numbers = #tpu.dot_dimension_numbers<[1], [0], [0], [1], [0, 0, 1, 1], [], []>} : vector<2x64xf32>, vector<64x256xf32>, vector<2x256xf32> -> vector<2x256xf32>
    %67 = arith.addf %65, %66 : vector<2x256xf32>
    %68 = arith.negf %67 : vector<2x256xf32>
    %69 = math.exp %68 : vector<2x256xf32>
    %cst_30 = arith.constant 1.000000e+00 : f32
    %70 = vector.broadcast %cst_30 : f32 to vector<2x256xf32>
    %71 = arith.addf %70, %69 : vector<2x256xf32>
    %72 = arith.divf %70, %71 : vector<2x256xf32>
    %73 = math.tanh %67 : vector<2x256xf32>
    %74 = vector.extract_strided_slice %72 {offsets = [0, 0], sizes = [2, 64], strides = [1, 1]} : vector<2x256xf32> to vector<2x64xf32>
    %75 = vector.extract_strided_slice %72 {offsets = [0, 64], sizes = [2, 64], strides = [1, 1]} : vector<2x256xf32> to vector<2x64xf32>
    %76 = vector.extract_strided_slice %73 {offsets = [0, 128], sizes = [2, 64], strides = [1, 1]} : vector<2x256xf32> to vector<2x64xf32>
    %77 = vector.extract_strided_slice %72 {offsets = [0, 192], sizes = [2, 64], strides = [1, 1]} : vector<2x256xf32> to vector<2x64xf32>
    %78 = arith.mulf %75, %64 : vector<2x64xf32>
    %79 = arith.mulf %74, %76 : vector<2x64xf32>
    %80 = arith.addf %78, %79 : vector<2x64xf32>
    %81 = math.tanh %80 : vector<2x64xf32>
    %82 = arith.mulf %77, %81 : vector<2x64xf32>
    %83 = vector.extract_strided_slice %82 {offsets = [0, 0], sizes = [2, 32], strides = [1, 1]} : vector<2x64xf32> to vector<2x32xf32>
    %c4_31 = arith.constant 4 : index
    %c0_32 = arith.constant 0 : index
    %84 = vector.load %arg11[%c4_31, %c0_32] : memref<16x32xf32, #tpu.memory_space<vmem>>, vector<2x32xf32>
    tpu.vector_store %arg11[%c4_31, %c0_32], %83 {strides = array<i32>} : memref<16x32xf32, #tpu.memory_space<vmem>>, vector<2x32xf32>,
    %85 = vector.extract_strided_slice %82 {offsets = [0, 32], sizes = [2, 32], strides = [1, 1]} : vector<2x64xf32> to vector<2x32xf32>
    %c10 = arith.constant 10 : index
    %c0_33 = arith.constant 0 : index
    %86 = vector.load %arg12[%c10, %c0_33] : memref<16x32xf32, #tpu.memory_space<vmem>>, vector<2x32xf32>
    tpu.vector_store %arg12[%c10, %c0_33], %85 {strides = array<i32>} : memref<16x32xf32, #tpu.memory_space<vmem>>, vector<2x32xf32>,
    %87 = vector.extract_strided_slice %8 {offsets = [4, 0], sizes = [2, 64], strides = [1, 1]} : vector<16x64xf32> to vector<2x64xf32>
    %cst_34 = arith.constant 5.000000e-01 : f32
    %88 = vector.broadcast %cst_34 : f32 to vector<2x64xf32>
    %89 = arith.cmpf ogt, %87, %88 : vector<2x64xf32>
    %90 = arith.select %89, %82, %63 : vector<2x64xi1>, vector<2x64xf32>
    %91 = arith.select %89, %80, %64 : vector<2x64xi1>, vector<2x64xf32>
    %c6 = arith.constant 6 : index
    %c0_35 = arith.constant 0 : index
    %92 = vector.load %arg10[%c6, %c0_35] : memref<16x256xf32, #tpu.memory_space<vmem>>, vector<2x256xf32>
    %cst_36 = arith.constant dense<0.000000e+00> : vector<2x256xf32>
    %93 = tpu.matmul %90, %7, %cst_36 {dimension_numbers = #tpu.dot_dimension_numbers<[1], [0], [0], [1], [0, 0, 1, 1], [], []>} : vector<2x64xf32>, vector<64x256xf32>, vector<2x256xf32> -> vector<2x256xf32>
    %94 = arith.addf %92, %93 : vector<2x256xf32>
    %95 = arith.negf %94 : vector<2x256xf32>
    %96 = math.exp %95 : vector<2x256xf32>
    %cst_37 = arith.constant 1.000000e+00 : f32
    %97 = vector.broadcast %cst_37 : f32 to vector<2x256xf32>
    %98 = arith.addf %97, %96 : vector<2x256xf32>
    %99 = arith.divf %97, %98 : vector<2x256xf32>
    %100 = math.tanh %94 : vector<2x256xf32>
    %101 = vector.extract_strided_slice %99 {offsets = [0, 0], sizes = [2, 64], strides = [1, 1]} : vector<2x256xf32> to vector<2x64xf32>
    %102 = vector.extract_strided_slice %99 {offsets = [0, 64], sizes = [2, 64], strides = [1, 1]} : vector<2x256xf32> to vector<2x64xf32>
    %103 = vector.extract_strided_slice %100 {offsets = [0, 128], sizes = [2, 64], strides = [1, 1]} : vector<2x256xf32> to vector<2x64xf32>
    %104 = vector.extract_strided_slice %99 {offsets = [0, 192], sizes = [2, 64], strides = [1, 1]} : vector<2x256xf32> to vector<2x64xf32>
    %105 = arith.mulf %102, %91 : vector<2x64xf32>
    %106 = arith.mulf %101, %103 : vector<2x64xf32>
    %107 = arith.addf %105, %106 : vector<2x64xf32>
    %108 = math.tanh %107 : vector<2x64xf32>
    %109 = arith.mulf %104, %108 : vector<2x64xf32>
    %110 = vector.extract_strided_slice %109 {offsets = [0, 0], sizes = [2, 32], strides = [1, 1]} : vector<2x64xf32> to vector<2x32xf32>
    %c6_38 = arith.constant 6 : index
    %c0_39 = arith.constant 0 : index
    %111 = vector.load %arg11[%c6_38, %c0_39] : memref<16x32xf32, #tpu.memory_space<vmem>>, vector<2x32xf32>
    tpu.vector_store %arg11[%c6_38, %c0_39], %110 {strides = array<i32>} : memref<16x32xf32, #tpu.memory_space<vmem>>, vector<2x32xf32>,
    %112 = vector.extract_strided_slice %109 {offsets = [0, 32], sizes = [2, 32], strides = [1, 1]} : vector<2x64xf32> to vector<2x32xf32>
    %c8 = arith.constant 8 : index
    %c0_40 = arith.constant 0 : index
    %113 = vector.load %arg12[%c8, %c0_40] : memref<16x32xf32, #tpu.memory_space<vmem>>, vector<2x32xf32>
    tpu.vector_store %arg12[%c8, %c0_40], %112 {strides = array<i32>} : memref<16x32xf32, #tpu.memory_space<vmem>>, vector<2x32xf32>,
    %114 = vector.extract_strided_slice %8 {offsets = [6, 0], sizes = [2, 64], strides = [1, 1]} : vector<16x64xf32> to vector<2x64xf32>
    %cst_41 = arith.constant 5.000000e-01 : f32
    %115 = vector.broadcast %cst_41 : f32 to vector<2x64xf32>
    %116 = arith.cmpf ogt, %114, %115 : vector<2x64xf32>
    %117 = arith.select %116, %109, %90 : vector<2x64xi1>, vector<2x64xf32>
    %118 = arith.select %116, %107, %91 : vector<2x64xi1>, vector<2x64xf32>
    %c8_42 = arith.constant 8 : index
    %c0_43 = arith.constant 0 : index
    %119 = vector.load %arg10[%c8_42, %c0_43] : memref<16x256xf32, #tpu.memory_space<vmem>>, vector<2x256xf32>
    %cst_44 = arith.constant dense<0.000000e+00> : vector<2x256xf32>
    %120 = tpu.matmul %117, %7, %cst_44 {dimension_numbers = #tpu.dot_dimension_numbers<[1], [0], [0], [1], [0, 0, 1, 1], [], []>} : vector<2x64xf32>, vector<64x256xf32>, vector<2x256xf32> -> vector<2x256xf32>
    %121 = arith.addf %119, %120 : vector<2x256xf32>
    %122 = arith.negf %121 : vector<2x256xf32>
    %123 = math.exp %122 : vector<2x256xf32>
    %cst_45 = arith.constant 1.000000e+00 : f32
    %124 = vector.broadcast %cst_45 : f32 to vector<2x256xf32>
    %125 = arith.addf %124, %123 : vector<2x256xf32>
    %126 = arith.divf %124, %125 : vector<2x256xf32>
    %127 = math.tanh %121 : vector<2x256xf32>
    %128 = vector.extract_strided_slice %126 {offsets = [0, 0], sizes = [2, 64], strides = [1, 1]} : vector<2x256xf32> to vector<2x64xf32>
    %129 = vector.extract_strided_slice %126 {offsets = [0, 64], sizes = [2, 64], strides = [1, 1]} : vector<2x256xf32> to vector<2x64xf32>
    %130 = vector.extract_strided_slice %127 {offsets = [0, 128], sizes = [2, 64], strides = [1, 1]} : vector<2x256xf32> to vector<2x64xf32>
    %131 = vector.extract_strided_slice %126 {offsets = [0, 192], sizes = [2, 64], strides = [1, 1]} : vector<2x256xf32> to vector<2x64xf32>
    %132 = arith.mulf %129, %118 : vector<2x64xf32>
    %133 = arith.mulf %128, %130 : vector<2x64xf32>
    %134 = arith.addf %132, %133 : vector<2x64xf32>
    %135 = math.tanh %134 : vector<2x64xf32>
    %136 = arith.mulf %131, %135 : vector<2x64xf32>
    %137 = vector.extract_strided_slice %136 {offsets = [0, 0], sizes = [2, 32], strides = [1, 1]} : vector<2x64xf32> to vector<2x32xf32>
    %c8_46 = arith.constant 8 : index
    %c0_47 = arith.constant 0 : index
    %138 = vector.load %arg11[%c8_46, %c0_47] : memref<16x32xf32, #tpu.memory_space<vmem>>, vector<2x32xf32>
    tpu.vector_store %arg11[%c8_46, %c0_47], %137 {strides = array<i32>} : memref<16x32xf32, #tpu.memory_space<vmem>>, vector<2x32xf32>,
    %139 = vector.extract_strided_slice %136 {offsets = [0, 32], sizes = [2, 32], strides = [1, 1]} : vector<2x64xf32> to vector<2x32xf32>
    %c6_48 = arith.constant 6 : index
    %c0_49 = arith.constant 0 : index
    %140 = vector.load %arg12[%c6_48, %c0_49] : memref<16x32xf32, #tpu.memory_space<vmem>>, vector<2x32xf32>
    tpu.vector_store %arg12[%c6_48, %c0_49], %139 {strides = array<i32>} : memref<16x32xf32, #tpu.memory_space<vmem>>, vector<2x32xf32>,
    %141 = vector.extract_strided_slice %8 {offsets = [8, 0], sizes = [2, 64], strides = [1, 1]} : vector<16x64xf32> to vector<2x64xf32>
    %cst_50 = arith.constant 5.000000e-01 : f32
    %142 = vector.broadcast %cst_50 : f32 to vector<2x64xf32>
    %143 = arith.cmpf ogt, %141, %142 : vector<2x64xf32>
    %144 = arith.select %143, %136, %117 : vector<2x64xi1>, vector<2x64xf32>
    %145 = arith.select %143, %134, %118 : vector<2x64xi1>, vector<2x64xf32>
    %c10_51 = arith.constant 10 : index
    %c0_52 = arith.constant 0 : index
    %146 = vector.load %arg10[%c10_51, %c0_52] : memref<16x256xf32, #tpu.memory_space<vmem>>, vector<2x256xf32>
    %cst_53 = arith.constant dense<0.000000e+00> : vector<2x256xf32>
    %147 = tpu.matmul %144, %7, %cst_53 {dimension_numbers = #tpu.dot_dimension_numbers<[1], [0], [0], [1], [0, 0, 1, 1], [], []>} : vector<2x64xf32>, vector<64x256xf32>, vector<2x256xf32> -> vector<2x256xf32>
    %148 = arith.addf %146, %147 : vector<2x256xf32>
    %149 = arith.negf %148 : vector<2x256xf32>
    %150 = math.exp %149 : vector<2x256xf32>
    %cst_54 = arith.constant 1.000000e+00 : f32
    %151 = vector.broadcast %cst_54 : f32 to vector<2x256xf32>
    %152 = arith.addf %151, %150 : vector<2x256xf32>
    %153 = arith.divf %151, %152 : vector<2x256xf32>
    %154 = math.tanh %148 : vector<2x256xf32>
    %155 = vector.extract_strided_slice %153 {offsets = [0, 0], sizes = [2, 64], strides = [1, 1]} : vector<2x256xf32> to vector<2x64xf32>
    %156 = vector.extract_strided_slice %153 {offsets = [0, 64], sizes = [2, 64], strides = [1, 1]} : vector<2x256xf32> to vector<2x64xf32>
    %157 = vector.extract_strided_slice %154 {offsets = [0, 128], sizes = [2, 64], strides = [1, 1]} : vector<2x256xf32> to vector<2x64xf32>
    %158 = vector.extract_strided_slice %153 {offsets = [0, 192], sizes = [2, 64], strides = [1, 1]} : vector<2x256xf32> to vector<2x64xf32>
    %159 = arith.mulf %156, %145 : vector<2x64xf32>
    %160 = arith.mulf %155, %157 : vector<2x64xf32>
    %161 = arith.addf %159, %160 : vector<2x64xf32>
    %162 = math.tanh %161 : vector<2x64xf32>
    %163 = arith.mulf %158, %162 : vector<2x64xf32>
    %164 = vector.extract_strided_slice %163 {offsets = [0, 0], sizes = [2, 32], strides = [1, 1]} : vector<2x64xf32> to vector<2x32xf32>
    %c10_55 = arith.constant 10 : index
    %c0_56 = arith.constant 0 : index
    %165 = vector.load %arg11[%c10_55, %c0_56] : memref<16x32xf32, #tpu.memory_space<vmem>>, vector<2x32xf32>
    tpu.vector_store %arg11[%c10_55, %c0_56], %164 {strides = array<i32>} : memref<16x32xf32, #tpu.memory_space<vmem>>, vector<2x32xf32>,
    %166 = vector.extract_strided_slice %163 {offsets = [0, 32], sizes = [2, 32], strides = [1, 1]} : vector<2x64xf32> to vector<2x32xf32>
    %c4_57 = arith.constant 4 : index
    %c0_58 = arith.constant 0 : index
    %167 = vector.load %arg12[%c4_57, %c0_58] : memref<16x32xf32, #tpu.memory_space<vmem>>, vector<2x32xf32>
    tpu.vector_store %arg12[%c4_57, %c0_58], %166 {strides = array<i32>} : memref<16x32xf32, #tpu.memory_space<vmem>>, vector<2x32xf32>,
    %168 = vector.extract_strided_slice %8 {offsets = [10, 0], sizes = [2, 64], strides = [1, 1]} : vector<16x64xf32> to vector<2x64xf32>
    %cst_59 = arith.constant 5.000000e-01 : f32
    %169 = vector.broadcast %cst_59 : f32 to vector<2x64xf32>
    %170 = arith.cmpf ogt, %168, %169 : vector<2x64xf32>
    %171 = arith.select %170, %163, %144 : vector<2x64xi1>, vector<2x64xf32>
    %172 = arith.select %170, %161, %145 : vector<2x64xi1>, vector<2x64xf32>
    %c12_60 = arith.constant 12 : index
    %c0_61 = arith.constant 0 : index
    %173 = vector.load %arg10[%c12_60, %c0_61] : memref<16x256xf32, #tpu.memory_space<vmem>>, vector<2x256xf32>
    %cst_62 = arith.constant dense<0.000000e+00> : vector<2x256xf32>
    %174 = tpu.matmul %171, %7, %cst_62 {dimension_numbers = #tpu.dot_dimension_numbers<[1], [0], [0], [1], [0, 0, 1, 1], [], []>} : vector<2x64xf32>, vector<64x256xf32>, vector<2x256xf32> -> vector<2x256xf32>
    %175 = arith.addf %173, %174 : vector<2x256xf32>
    %176 = arith.negf %175 : vector<2x256xf32>
    %177 = math.exp %176 : vector<2x256xf32>
    %cst_63 = arith.constant 1.000000e+00 : f32
    %178 = vector.broadcast %cst_63 : f32 to vector<2x256xf32>
    %179 = arith.addf %178, %177 : vector<2x256xf32>
    %180 = arith.divf %178, %179 : vector<2x256xf32>
    %181 = math.tanh %175 : vector<2x256xf32>
    %182 = vector.extract_strided_slice %180 {offsets = [0, 0], sizes = [2, 64], strides = [1, 1]} : vector<2x256xf32> to vector<2x64xf32>
    %183 = vector.extract_strided_slice %180 {offsets = [0, 64], sizes = [2, 64], strides = [1, 1]} : vector<2x256xf32> to vector<2x64xf32>
    %184 = vector.extract_strided_slice %181 {offsets = [0, 128], sizes = [2, 64], strides = [1, 1]} : vector<2x256xf32> to vector<2x64xf32>
    %185 = vector.extract_strided_slice %180 {offsets = [0, 192], sizes = [2, 64], strides = [1, 1]} : vector<2x256xf32> to vector<2x64xf32>
    %186 = arith.mulf %183, %172 : vector<2x64xf32>
    %187 = arith.mulf %182, %184 : vector<2x64xf32>
    %188 = arith.addf %186, %187 : vector<2x64xf32>
    %189 = math.tanh %188 : vector<2x64xf32>
    %190 = arith.mulf %185, %189 : vector<2x64xf32>
    %191 = vector.extract_strided_slice %190 {offsets = [0, 0], sizes = [2, 32], strides = [1, 1]} : vector<2x64xf32> to vector<2x32xf32>
    %c12_64 = arith.constant 12 : index
    %c0_65 = arith.constant 0 : index
    %192 = vector.load %arg11[%c12_64, %c0_65] : memref<16x32xf32, #tpu.memory_space<vmem>>, vector<2x32xf32>
    tpu.vector_store %arg11[%c12_64, %c0_65], %191 {strides = array<i32>} : memref<16x32xf32, #tpu.memory_space<vmem>>, vector<2x32xf32>,
    %193 = vector.extract_strided_slice %190 {offsets = [0, 32], sizes = [2, 32], strides = [1, 1]} : vector<2x64xf32> to vector<2x32xf32>
    %c2_66 = arith.constant 2 : index
    %c0_67 = arith.constant 0 : index
    %194 = vector.load %arg12[%c2_66, %c0_67] : memref<16x32xf32, #tpu.memory_space<vmem>>, vector<2x32xf32>
    tpu.vector_store %arg12[%c2_66, %c0_67], %193 {strides = array<i32>} : memref<16x32xf32, #tpu.memory_space<vmem>>, vector<2x32xf32>,
    %195 = vector.extract_strided_slice %8 {offsets = [12, 0], sizes = [2, 64], strides = [1, 1]} : vector<16x64xf32> to vector<2x64xf32>
    %cst_68 = arith.constant 5.000000e-01 : f32
    %196 = vector.broadcast %cst_68 : f32 to vector<2x64xf32>
    %197 = arith.cmpf ogt, %195, %196 : vector<2x64xf32>
    %198 = arith.select %197, %190, %171 : vector<2x64xi1>, vector<2x64xf32>
    %199 = arith.select %197, %188, %172 : vector<2x64xi1>, vector<2x64xf32>
    %c14_69 = arith.constant 14 : index
    %c0_70 = arith.constant 0 : index
    %200 = vector.load %arg10[%c14_69, %c0_70] : memref<16x256xf32, #tpu.memory_space<vmem>>, vector<2x256xf32>
    %cst_71 = arith.constant dense<0.000000e+00> : vector<2x256xf32>
    %201 = tpu.matmul %198, %7, %cst_71 {dimension_numbers = #tpu.dot_dimension_numbers<[1], [0], [0], [1], [0, 0, 1, 1], [], []>} : vector<2x64xf32>, vector<64x256xf32>, vector<2x256xf32> -> vector<2x256xf32>
    %202 = arith.addf %200, %201 : vector<2x256xf32>
    %203 = arith.negf %202 : vector<2x256xf32>
    %204 = math.exp %203 : vector<2x256xf32>
    %cst_72 = arith.constant 1.000000e+00 : f32
    %205 = vector.broadcast %cst_72 : f32 to vector<2x256xf32>
    %206 = arith.addf %205, %204 : vector<2x256xf32>
    %207 = arith.divf %205, %206 : vector<2x256xf32>
    %208 = math.tanh %202 : vector<2x256xf32>
    %209 = vector.extract_strided_slice %207 {offsets = [0, 0], sizes = [2, 64], strides = [1, 1]} : vector<2x256xf32> to vector<2x64xf32>
    %210 = vector.extract_strided_slice %207 {offsets = [0, 64], sizes = [2, 64], strides = [1, 1]} : vector<2x256xf32> to vector<2x64xf32>
    %211 = vector.extract_strided_slice %208 {offsets = [0, 128], sizes = [2, 64], strides = [1, 1]} : vector<2x256xf32> to vector<2x64xf32>
    %212 = vector.extract_strided_slice %207 {offsets = [0, 192], sizes = [2, 64], strides = [1, 1]} : vector<2x256xf32> to vector<2x64xf32>
    %213 = arith.mulf %210, %199 : vector<2x64xf32>
    %214 = arith.mulf %209, %211 : vector<2x64xf32>
    %215 = arith.addf %213, %214 : vector<2x64xf32>
    %216 = math.tanh %215 : vector<2x64xf32>
    %217 = arith.mulf %212, %216 : vector<2x64xf32>
    %218 = vector.extract_strided_slice %217 {offsets = [0, 0], sizes = [2, 32], strides = [1, 1]} : vector<2x64xf32> to vector<2x32xf32>
    %c14_73 = arith.constant 14 : index
    %c0_74 = arith.constant 0 : index
    %219 = vector.load %arg11[%c14_73, %c0_74] : memref<16x32xf32, #tpu.memory_space<vmem>>, vector<2x32xf32>
    tpu.vector_store %arg11[%c14_73, %c0_74], %218 {strides = array<i32>} : memref<16x32xf32, #tpu.memory_space<vmem>>, vector<2x32xf32>,
    %220 = vector.extract_strided_slice %217 {offsets = [0, 32], sizes = [2, 32], strides = [1, 1]} : vector<2x64xf32> to vector<2x32xf32>
    %c0_75 = arith.constant 0 : index
    %c0_76 = arith.constant 0 : index
    %221 = vector.load %arg12[%c0_75, %c0_76] : memref<16x32xf32, #tpu.memory_space<vmem>>, vector<2x32xf32>
    tpu.vector_store %arg12[%c0_75, %c0_76], %220 {strides = array<i32>} : memref<16x32xf32, #tpu.memory_space<vmem>>, vector<2x32xf32>,
    %c0_77 = arith.constant 0 : index
    %c0_78 = arith.constant 0 : index
    %222 = vector.load %arg11[%c0_77, %c0_78] : memref<16x32xf32, #tpu.memory_space<vmem>>, vector<16x32xf32>
    %c0_79 = arith.constant 0 : index
    %c0_80 = arith.constant 0 : index
    %223 = vector.load %arg6[%c0_79, %c0_80] : memref<32x6xf32, #tpu.memory_space<vmem>>, vector<32x6xf32>
    %cst_81 = arith.constant dense<0.000000e+00> : vector<16x6xf32>
    %224 = tpu.matmul %222, %223, %cst_81 {dimension_numbers = #tpu.dot_dimension_numbers<[1], [0], [0], [1], [0, 0, 1, 1], [], []>} : vector<16x32xf32>, vector<32x6xf32>, vector<16x6xf32> -> vector<16x6xf32>
    %c0_82 = arith.constant 0 : index
    %c0_83 = arith.constant 0 : index
    %225 = vector.load %arg12[%c0_82, %c0_83] : memref<16x32xf32, #tpu.memory_space<vmem>>, vector<16x32xf32>
    %c0_84 = arith.constant 0 : index
    %c0_85 = arith.constant 0 : index
    %226 = vector.load %arg7[%c0_84, %c0_85] : memref<32x6xf32, #tpu.memory_space<vmem>>, vector<32x6xf32>
    %cst_86 = arith.constant dense<0.000000e+00> : vector<16x6xf32>
    %227 = tpu.matmul %225, %226, %cst_86 {dimension_numbers = #tpu.dot_dimension_numbers<[1], [0], [0], [1], [0, 0, 1, 1], [], []>} : vector<16x32xf32>, vector<32x6xf32>, vector<16x6xf32> -> vector<16x6xf32>
    %228 = arith.addf %224, %227 : vector<16x6xf32>
    %229 = vector.extract_strided_slice %8 {offsets = [0, 0], sizes = [16, 1], strides = [1, 1]} : vector<16x64xf32> to vector<16x1xf32>
    %230 = vector.extract_strided_slice %228 {offsets = [0, 0], sizes = [16, 5], strides = [1, 1]} : vector<16x6xf32> to vector<16x5xf32>
    %cst_87 = arith.constant 1.000000e+00 : f32
    %231 = vector.broadcast %cst_87 : f32 to vector<16x1xf32>
    %232 = arith.subf %229, %231 : vector<16x1xf32>
    %cst_88 = arith.constant 1.000000e+30 : f32
    %233 = vector.broadcast %cst_88 : f32 to vector<16x1xf32>
    %234 = arith.mulf %232, %233 : vector<16x1xf32>
    %235 = vector.broadcast %234 : vector<16x1xf32> to vector<16x5xf32>
    %236 = arith.addf %230, %235 : vector<16x5xf32>
    %237 = vector.extract_strided_slice %228 {offsets = [0, 5], sizes = [16, 1], strides = [1, 1]} : vector<16x6xf32> to vector<16x1xf32>
    %238 = vector.extract_strided_slice %236 {offsets = [0, 0], sizes = [2, 5], strides = [1, 1]} : vector<16x5xf32> to vector<2x5xf32>
    %239 = vector.extract_strided_slice %236 {offsets = [2, 0], sizes = [2, 5], strides = [1, 1]} : vector<16x5xf32> to vector<2x5xf32>
    %240 = arith.maximumf %238, %239 : vector<2x5xf32>
    %241 = vector.extract_strided_slice %236 {offsets = [4, 0], sizes = [2, 5], strides = [1, 1]} : vector<16x5xf32> to vector<2x5xf32>
    %242 = arith.maximumf %240, %241 : vector<2x5xf32>
    %243 = vector.extract_strided_slice %236 {offsets = [6, 0], sizes = [2, 5], strides = [1, 1]} : vector<16x5xf32> to vector<2x5xf32>
    %244 = arith.maximumf %242, %243 : vector<2x5xf32>
    %245 = vector.extract_strided_slice %236 {offsets = [8, 0], sizes = [2, 5], strides = [1, 1]} : vector<16x5xf32> to vector<2x5xf32>
    %246 = arith.maximumf %244, %245 : vector<2x5xf32>
    %247 = vector.extract_strided_slice %236 {offsets = [10, 0], sizes = [2, 5], strides = [1, 1]} : vector<16x5xf32> to vector<2x5xf32>
    %248 = arith.maximumf %246, %247 : vector<2x5xf32>
    %249 = vector.extract_strided_slice %236 {offsets = [12, 0], sizes = [2, 5], strides = [1, 1]} : vector<16x5xf32> to vector<2x5xf32>
    %250 = arith.maximumf %248, %249 : vector<2x5xf32>
    %251 = vector.extract_strided_slice %236 {offsets = [14, 0], sizes = [2, 5], strides = [1, 1]} : vector<16x5xf32> to vector<2x5xf32>
    %252 = arith.maximumf %250, %251 : vector<2x5xf32>
    %cst_89 = arith.constant 0.000000e+00 : f32
    %253 = vector.broadcast %cst_89 : f32 to vector<2x5xf32>
    %cst_90 = arith.constant 0.000000e+00 : f32
    %254 = vector.broadcast %cst_90 : f32 to vector<2x5xf32>
    %255 = vector.extract_strided_slice %236 {offsets = [0, 0], sizes = [2, 5], strides = [1, 1]} : vector<16x5xf32> to vector<2x5xf32>
    %256 = arith.subf %255, %252 : vector<2x5xf32>
    %257 = math.exp %256 : vector<2x5xf32>
    %258 = arith.addf %253, %257 : vector<2x5xf32>
    %259 = vector.extract_strided_slice %237 {offsets = [0, 0], sizes = [2, 1], strides = [1, 1]} : vector<16x1xf32> to vector<2x1xf32>
    %260 = vector.broadcast %259 : vector<2x1xf32> to vector<2x5xf32>
    %261 = arith.mulf %257, %260 : vector<2x5xf32>
    %262 = arith.addf %254, %261 : vector<2x5xf32>
    %263 = vector.extract_strided_slice %236 {offsets = [2, 0], sizes = [2, 5], strides = [1, 1]} : vector<16x5xf32> to vector<2x5xf32>
    %264 = arith.subf %263, %252 : vector<2x5xf32>
    %265 = math.exp %264 : vector<2x5xf32>
    %266 = arith.addf %258, %265 : vector<2x5xf32>
    %267 = vector.extract_strided_slice %237 {offsets = [2, 0], sizes = [2, 1], strides = [1, 1]} : vector<16x1xf32> to vector<2x1xf32>
    %268 = vector.broadcast %267 : vector<2x1xf32> to vector<2x5xf32>
    %269 = arith.mulf %265, %268 : vector<2x5xf32>
    %270 = arith.addf %262, %269 : vector<2x5xf32>
    %271 = vector.extract_strided_slice %236 {offsets = [4, 0], sizes = [2, 5], strides = [1, 1]} : vector<16x5xf32> to vector<2x5xf32>
    %272 = arith.subf %271, %252 : vector<2x5xf32>
    %273 = math.exp %272 : vector<2x5xf32>
    %274 = arith.addf %266, %273 : vector<2x5xf32>
    %275 = vector.extract_strided_slice %237 {offsets = [4, 0], sizes = [2, 1], strides = [1, 1]} : vector<16x1xf32> to vector<2x1xf32>
    %276 = vector.broadcast %275 : vector<2x1xf32> to vector<2x5xf32>
    %277 = arith.mulf %273, %276 : vector<2x5xf32>
    %278 = arith.addf %270, %277 : vector<2x5xf32>
    %279 = vector.extract_strided_slice %236 {offsets = [6, 0], sizes = [2, 5], strides = [1, 1]} : vector<16x5xf32> to vector<2x5xf32>
    %280 = arith.subf %279, %252 : vector<2x5xf32>
    %281 = math.exp %280 : vector<2x5xf32>
    %282 = arith.addf %274, %281 : vector<2x5xf32>
    %283 = vector.extract_strided_slice %237 {offsets = [6, 0], sizes = [2, 1], strides = [1, 1]} : vector<16x1xf32> to vector<2x1xf32>
    %284 = vector.broadcast %283 : vector<2x1xf32> to vector<2x5xf32>
    %285 = arith.mulf %281, %284 : vector<2x5xf32>
    %286 = arith.addf %278, %285 : vector<2x5xf32>
    %287 = vector.extract_strided_slice %236 {offsets = [8, 0], sizes = [2, 5], strides = [1, 1]} : vector<16x5xf32> to vector<2x5xf32>
    %288 = arith.subf %287, %252 : vector<2x5xf32>
    %289 = math.exp %288 : vector<2x5xf32>
    %290 = arith.addf %282, %289 : vector<2x5xf32>
    %291 = vector.extract_strided_slice %237 {offsets = [8, 0], sizes = [2, 1], strides = [1, 1]} : vector<16x1xf32> to vector<2x1xf32>
    %292 = vector.broadcast %291 : vector<2x1xf32> to vector<2x5xf32>
    %293 = arith.mulf %289, %292 : vector<2x5xf32>
    %294 = arith.addf %286, %293 : vector<2x5xf32>
    %295 = vector.extract_strided_slice %236 {offsets = [10, 0], sizes = [2, 5], strides = [1, 1]} : vector<16x5xf32> to vector<2x5xf32>
    %296 = arith.subf %295, %252 : vector<2x5xf32>
    %297 = math.exp %296 : vector<2x5xf32>
    %298 = arith.addf %290, %297 : vector<2x5xf32>
    %299 = vector.extract_strided_slice %237 {offsets = [10, 0], sizes = [2, 1], strides = [1, 1]} : vector<16x1xf32> to vector<2x1xf32>
    %300 = vector.broadcast %299 : vector<2x1xf32> to vector<2x5xf32>
    %301 = arith.mulf %297, %300 : vector<2x5xf32>
    %302 = arith.addf %294, %301 : vector<2x5xf32>
    %303 = vector.extract_strided_slice %236 {offsets = [12, 0], sizes = [2, 5], strides = [1, 1]} : vector<16x5xf32> to vector<2x5xf32>
    %304 = arith.subf %303, %252 : vector<2x5xf32>
    %305 = math.exp %304 : vector<2x5xf32>
    %306 = arith.addf %298, %305 : vector<2x5xf32>
    %307 = vector.extract_strided_slice %237 {offsets = [12, 0], sizes = [2, 1], strides = [1, 1]} : vector<16x1xf32> to vector<2x1xf32>
    %308 = vector.broadcast %307 : vector<2x1xf32> to vector<2x5xf32>
    %309 = arith.mulf %305, %308 : vector<2x5xf32>
    %310 = arith.addf %302, %309 : vector<2x5xf32>
    %311 = vector.extract_strided_slice %236 {offsets = [14, 0], sizes = [2, 5], strides = [1, 1]} : vector<16x5xf32> to vector<2x5xf32>
    %312 = arith.subf %311, %252 : vector<2x5xf32>
    %313 = math.exp %312 : vector<2x5xf32>
    %314 = arith.addf %306, %313 : vector<2x5xf32>
    %315 = vector.extract_strided_slice %237 {offsets = [14, 0], sizes = [2, 1], strides = [1, 1]} : vector<16x1xf32> to vector<2x1xf32>
    %316 = vector.broadcast %315 : vector<2x1xf32> to vector<2x5xf32>
    %317 = arith.mulf %313, %316 : vector<2x5xf32>
    %318 = arith.addf %310, %317 : vector<2x5xf32>
    %319 = arith.divf %318, %314 : vector<2x5xf32>
    %c0_91 = arith.constant 0 : index
    %c0_92 = arith.constant 0 : index
    %320 = vector.load %arg8[%c0_91, %c0_92] : memref<1x1xf32, #tpu.memory_space<vmem>>, vector<1x1xf32>
    %321 = vector.broadcast %320 : vector<1x1xf32> to vector<2x5xf32>
    %322 = arith.addf %319, %321 : vector<2x5xf32>
    %cst_93 = arith.constant dense<0xFF800000> : vector<2xf32>
    %323 = vector.multi_reduction <maximumf>, %322, %cst_93 [1] : vector<2x5xf32> to vector<2xf32>
    %324 = vector.shape_cast %323 : vector<2xf32> to vector<2x1xf32>
    %325 = vector.broadcast %324 : vector<2x1xf32> to vector<2x5xf32>
    %326 = arith.subf %322, %325 : vector<2x5xf32>
    %327 = math.exp %326 : vector<2x5xf32>
    %cst_94 = arith.constant dense<0.000000e+00> : vector<2xf32>
    %328 = vector.multi_reduction <add>, %327, %cst_94 [1] : vector<2x5xf32> to vector<2xf32>
    %329 = vector.shape_cast %328 : vector<2xf32> to vector<2x1xf32>
    %330 = math.log %329 : vector<2x1xf32>
    %331 = arith.addf %324, %330 : vector<2x1xf32>
    %332 = vector.broadcast %331 : vector<2x1xf32> to vector<2x5xf32>
    %333 = arith.subf %322, %332 : vector<2x5xf32>
    %c0_95 = arith.constant 0 : index
    %c0_96 = arith.constant 0 : index
    %334 = vector.load %arg9[%c0_95, %c0_96] : memref<2x5xf32, #tpu.memory_space<vmem>>, vector<2x5xf32>
    tpu.vector_store %arg9[%c0_95, %c0_96], %333 {strides = array<i32>} : memref<2x5xf32, #tpu.memory_space<vmem>>, vector<2x5xf32>,
    return
  }
  func.func @transform_0(%arg0: i32) -> (i32, i32) {
    %c0_i32 = arith.constant 0 : i32
    %c0_i32_0 = arith.constant 0 : i32
    %c0_i32_1 = arith.constant 0 : i32
    return %c0_i32, %c0_i32_0 : i32, i32
  }
  func.func @transform_1(%arg0: i32) -> (i32, i32) {
    %c0_i32 = arith.constant 0 : i32
    %c0_i32_0 = arith.constant 0 : i32
    %c0_i32_1 = arith.constant 0 : i32
    return %c0_i32, %c0_i32_0 : i32, i32
  }
  func.func @transform_2(%arg0: i32) -> (i32, i32) {
    %c0_i32 = arith.constant 0 : i32
    %c0_i32_0 = arith.constant 0 : i32
    %c0_i32_1 = arith.constant 0 : i32
    return %c0_i32, %c0_i32_0 : i32, i32
  }
  func.func @transform_3(%arg0: i32) -> (i32, i32) {
    %c0_i32 = arith.constant 0 : i32
    %c0_i32_0 = arith.constant 0 : i32
    %c0_i32_1 = arith.constant 0 : i32
    return %c0_i32, %c0_i32_0 : i32, i32
  }
  func.func @transform_4(%arg0: i32) -> (i32, i32) {
    %c0_i32 = arith.constant 0 : i32
    %c0_i32_0 = arith.constant 0 : i32
    %c0_i32_1 = arith.constant 0 : i32
    return %c0_i32, %c0_i32_0 : i32, i32
  }
  func.func @transform_5(%arg0: i32) -> (i32, i32) {
    %c0_i32 = arith.constant 0 : i32
    %c0_i32_0 = arith.constant 0 : i32
    %c0_i32_1 = arith.constant 0 : i32
    return %c0_i32, %c0_i32_0 : i32, i32
  }
  func.func @transform_6(%arg0: i32) -> (i32, i32) {
    %c0_i32 = arith.constant 0 : i32
    %c0_i32_0 = arith.constant 0 : i32
    %c0_i32_1 = arith.constant 0 : i32
    return %c0_i32, %c0_i32_0 : i32, i32
  }
  func.func @transform_7(%arg0: i32) -> (i32, i32) {
    %c0_i32 = arith.constant 0 : i32
    %c0_i32_0 = arith.constant 0 : i32
    %c0_i32_1 = arith.constant 0 : i32
    return %c0_i32, %c0_i32_0 : i32, i32
  }
  func.func @transform_8(%arg0: i32) -> (i32, i32) {
    %c0_i32 = arith.constant 0 : i32
    %c0_i32_0 = arith.constant 0 : i32
    %c0_i32_1 = arith.constant 0 : i32
    return %c0_i32, %c0_i32_0 : i32, i32
  }
}

</mosaic_0001>

<llo_original>
// kernel: tpu_custom_call.1
$region0: #{tpu_custom_call.1}
  #allocation0 [shape = 'u32[]', space=smem, size = 0x4, offset = 0x4, fixed_abs, tag = 'smem constant byte address 0x4 - core index']
  #allocation1 [shape = 'u32[144,128]{1,0:T(1,128)}', space=vmem, size = 0x12000, scoped, tag = 'internal scratch']
  #allocation2 [shape = 'f32[16,256]{1,0:T(8,128)}', space=vmem, size = 0x4000, scoped, tag = 'scratch operand']
  #allocation3 [shape = 'f32[16,32]{1,0:T(8,128)}', space=vmem, size = 0x2000, scoped, tag = 'scratch operand']
  #allocation4 [shape = 'f32[16,32]{1,0:T(8,128)}', space=vmem, size = 0x2000, scoped, tag = 'scratch operand']
  #allocation5 [shape = 'f32[1,1]{1,0:T(1,128)S(1)}', space=vmem, size = 0x200, scoped, tag = 'scoped memory for tpu_custom_call.1']
  %s0 = inlined_call_operand.vmem [shape: f32[16,32], index: 0, kind: input, shape index: {}]
  %s1 = inlined_call_operand.hbm [shape: f32[16,64], index: 1, kind: input, shape index: {}]
  %s2 = inlined_call_operand.vmem [shape: f32[32,256], index: 2, kind: input, shape index: {}]
  %s3 = inlined_call_operand.vmem [shape: f32[1,256], index: 3, kind: input, shape index: {}]
  %s4 = inlined_call_operand.hbm [shape: f32[64,256], index: 4, kind: input, shape index: {}]
  %s5 = inlined_call_operand.vmem [shape: f32[32,6], index: 5, kind: input, shape index: {}]
  %s6 = inlined_call_operand.vmem [shape: f32[32,6], index: 6, kind: input, shape index: {}]
  %s7 = inlined_call_operand.<no memory space> [shape: f32[1,1], index: 7, kind: input, shape index: {}]
  %s8 = inlined_call_operand.hbm [shape: f32[2,5], index: 8, kind: output, shape index: {}]
  %s9 = sld [smem:[#allocation0]]
  $region50: #{tpu_custom_call.1} parent=0
    _
  %s11 = ssub.s32 1, %s9
  %s12 = scalar_select 0, %s11, %s9
  %v13 = vstv %s7
  %14 = vst [vmem:[#allocation5] sm:$0x1] %v13
  $region1: #{tpu_custom_call.1} parent=0
    #allocation6 [shape = 'u8[8192]{0}', space=vmem, size = 0x2000, scoped, tag = 'input window, operand 1, single buffered']
    #allocation7 [shape = 's32[1]{0}', space=sflag, size = 0x4, scoped, tag = 'scoped memory for tpu_custom_call.1']
    #allocation8 [shape = 's32[1]{0}', space=sflag, size = 0x4, scoped, tag = 'scoped memory for tpu_custom_call.1']
    #allocation9 [shape = 'u8[65536]{0}', space=vmem, size = 0x10000, scoped, tag = 'input window, operand 4, single buffered']
    #allocation10 [shape = 's32[1]{0}', space=sflag, size = 0x4, scoped, tag = 'scoped memory for tpu_custom_call.1']
    #allocation11 [shape = 'u8[1024]{0}', space=vmem, size = 0x400, scoped, tag = 'output window, operand 0, single buffered']
    %15 = vsyncpa [#allocation7], 0
    %16 = vsyncpa [#allocation10], 0
    %17 = vsyncpa [#allocation8], 0
    // Predicated region
    $region2: #{tpu_custom_call.1} parent=1 // pred_check
      _
    $region3: #{tpu_custom_call.1} parent=1 // pred_check_branch
      %19 = sbr.rel (0) target = $region5
    $region4: #{tpu_custom_call.1} parent=1 // pred_region
      _
    $region5: #{tpu_custom_call.1} parent=1 // pred_fallthru
      _
    // Predicated region
    $region6: #{tpu_custom_call.1} parent=1 // pred_check
      _
    $region7: #{tpu_custom_call.1} parent=1 // pred_check_branch
      %21 = sbr.rel (0) target = $region9
    $region8: #{tpu_custom_call.1} parent=1 // pred_region
      %s23 = ssub.s32 256, 256
      %24 = vsyncadd [#allocation7], %s23
      %s25 = sshll.u32 [#allocation6], 4
      %s26 = int_to_ptr.vmem [resolvable:$true] %s25
      %31 = dma.hbm_to_vmem [thread:$0]  %s1, 256, %s26, [#allocation7], 128, 128, 8
    $region9: #{tpu_custom_call.1} parent=1 // pred_fallthru
      _
    // Predicated region
    $region10: #{tpu_custom_call.1} parent=1 // pred_check
      _
    $region11: #{tpu_custom_call.1} parent=1 // pred_check_branch
      %33 = sbr.rel (0) target = $region13
    $region12: #{tpu_custom_call.1} parent=1 // pred_region
      _
    $region13: #{tpu_custom_call.1} parent=1 // pred_fallthru
      _
    // Predicated region
    $region14: #{tpu_custom_call.1} parent=1 // pred_check
      _
    $region15: #{tpu_custom_call.1} parent=1 // pred_check_branch
      %35 = sbr.rel (0) target = $region17
    $region16: #{tpu_custom_call.1} parent=1 // pred_region
      _
    $region17: #{tpu_custom_call.1} parent=1 // pred_fallthru
      _
    // Predicated region
    $region18: #{tpu_custom_call.1} parent=1 // pred_check
      _
    $region19: #{tpu_custom_call.1} parent=1 // pred_check_branch
      %37 = sbr.rel (0) target = $region21
    $region20: #{tpu_custom_call.1} parent=1 // pred_region
      %s39 = ssub.s32 2048, 2048
      %40 = vsyncadd [#allocation10], %s39
      %s41 = sshll.u32 [#allocation9], 4
      %s42 = int_to_ptr.vmem [resolvable:$true] %s41
      %47 = dma.hbm_to_vmem [thread:$0]  %s4, 2048, %s42, [#allocation10], 256, 256, 16
    $region21: #{tpu_custom_call.1} parent=1 // pred_fallthru
      _
    // Predicated region
    $region22: #{tpu_custom_call.1} parent=1 // pred_check
      _
    $region23: #{tpu_custom_call.1} parent=1 // pred_check_branch
      %49 = sbr.rel (0) target = $region25
    $region24: #{tpu_custom_call.1} parent=1 // pred_region
      _
    $region25: #{tpu_custom_call.1} parent=1 // pred_fallthru
      _
    // Predicated region
    $region26: #{tpu_custom_call.1} parent=1 // pred_check
      _
    $region27: #{tpu_custom_call.1} parent=1 // pred_check_branch
      %51 = sbr.rel (0) target = $region29
    $region28: #{tpu_custom_call.1} parent=1 // pred_region
      _
    $region29: #{tpu_custom_call.1} parent=1 // pred_fallthru
      _
    // Predicated region
    $region30: #{tpu_custom_call.1} parent=1 // pred_check
      _
    $region31: #{tpu_custom_call.1} parent=1 // pred_check_branch
      %53 = sbr.rel (0) target = $region33
    $region32: #{tpu_custom_call.1} parent=1 // pred_region
      _
    $region33: #{tpu_custom_call.1} parent=1 // pred_fallthru
      _
    // Predicated region
    $region34: #{tpu_custom_call.1} parent=1 // pred_check
      _
    $region35: #{tpu_custom_call.1} parent=1 // pred_check_branch
      %55 = sbr.rel (0) target = $region37
    $region36: #{tpu_custom_call.1} parent=1 // pred_region
      %56 = dma.done [#allocation7], 256
    $region37: #{tpu_custom_call.1} parent=1 // pred_fallthru
      _
    // Predicated region
    $region38: #{tpu_custom_call.1} parent=1 // pred_check
      _
    $region39: #{tpu_custom_call.1} parent=1 // pred_check_branch
      %58 = sbr.rel (0) target = $region41
    $region40: #{tpu_custom_call.1} parent=1 // pred_region
      %59 = dma.done [#allocation10], 2048
    $region41: #{tpu_custom_call.1} parent=1 // pred_fallthru
      _
    %v60 = vld [vmem:[%s0] sm:$0xff]
    %v61 = vld [vmem:[%s0 + $0x8] sm:$0xff]
    %v62 = vld [vmem:[%s2] sm:$0xff]
    %v63 = vld [vmem:[%s2 + $0x8] sm:$0xff]
    %v64 = vld [vmem:[%s2 + $0x10] sm:$0xff]
    %v65 = vld [vmem:[%s2 + $0x18] sm:$0xff]
    %v66 = vld [vmem:[%s2 + $0x20] sm:$0xff]
    %v67 = vld [vmem:[%s2 + $0x28] sm:$0xff]
    %v68 = vld [vmem:[%s2 + $0x30] sm:$0xff]
    %v69 = vld [vmem:[%s2 + $0x38] sm:$0xff]
    %v70 = vld [vmem:[%s3] sm:$0x3]
    %v72 = vlaneseq
    %v73 = vshrl.u32 %v72, 7
    %v74 = vsub.s32 0, %v73
    %v75 = vrot.slane %v70, %v74
    %v76 = vlaneseq
    %v77 = vshrl.u32 %v76, 7
    %v78 = vsub.s32 1, %v77
    %v79 = vrot.slane %v70, %v78
    %vm82 = vcmask 261120
    %v84 = vsel %vm82, %v60, 0
    %v87 = vsel %vm82, %v61, 0
    %89 = vmatprep.subr.mxu0 %v63
    %90 = vmatpush1.msra.mxu0 %v62
    %91 = vmatprep.subr.mxu0 %v65
    %92 = vmatpush1.msra.mxu0 %v64
    %93 = vmatprep.subr.mxu0 %v67
    %94 = vmatpush1.msra.mxu0 %v66
    %95 = vmatprep.subr.mxu0 %v69
    %96 = vmatpush1.msra.mxu0 %v68
    %97 = vmatprep.subr.mxu0 0.0
    %98 = vmatpush1.msra.mxu0 0.0
    %99 = vmatprep.subr.mxu0 0.0
    %100 = vmatpush1.msra.mxu0 0.0
    %101 = vmatprep.subr.mxu0 0.0
    %102 = vmatpush1.msra.mxu0 0.0
    %103 = vmatprep.subr.mxu0 0.0
    %104 = vmatpush1.msra.mxu0 0.0
    %105 = vmatprep.subr.mxu0 0.0
    %106 = vmatpush1.msra.mxu0 0.0
    %107 = vmatprep.subr.mxu0 0.0
    %108 = vmatpush1.msra.mxu0 0.0
    %109 = vmatprep.subr.mxu0 0.0
    %110 = vmatpush1.msra.mxu0 0.0
    %111 = vmatprep.subr.mxu0 0.0
    %112 = vmatpush1.msra.mxu0 0.0
    %113 = vmatprep.subr.mxu0 0.0
    %114 = vmatpush1.msra.mxu0 0.0
    %115 = vmatprep.subr.mxu0 0.0
    %116 = vmatpush1.msra.mxu0 0.0
    %117 = vmatprep.subr.mxu0 0.0
    %118 = vmatpush1.msra.mxu0 0.0
    %119 = vmatprep.subr.mxu0 0.0
    %120 = vmatpush1.msra.mxu0 0.0
    %121 = vmatprep.subr.mxu0 0.0
    %122 = vmatpush1.msra.mxu0 0.0
    %123 = vmatprep.subr.mxu0 0.0
    %124 = vmatpush1.msra.mxu0 0.0
    %125 = vmatprep.subr.mxu0 0.0
    %126 = vmatpush1.msra.mxu0 0.0
    %127 = vmatprep.subr.mxu0 0.0
    %128 = vmatpush1.msra.mxu0 0.0
    %129 = vmatprep.subr.mxu0 0.0
    %130 = vmatpush1.msra.mxu0 0.0
    %131 = vmatprep.subr.mxu0 0.0
    %132 = vmatpush1.msra.mxu0 0.0
    %133 = vmatprep.subr.mxu0 0.0
    %134 = vmatpush1.msra.mxu0 0.0
    %135 = vmatprep.subr.mxu0 0.0
    %136 = vmatpush1.msra.mxu0 0.0
    %137 = vmatprep.subr.mxu0 0.0
    %138 = vmatpush1.msra.mxu0 0.0
    %139 = vmatprep.subr.mxu0 0.0
    %140 = vmatpush1.msra.mxu0 0.0
    %141 = vmatprep.subr.mxu0 0.0
    %142 = vmatpush1.msra.mxu0 0.0
    %143 = vmatprep.subr.mxu0 0.0
    %144 = vmatpush1.msra.mxu0 0.0
    %145 = vmatprep.subr.mxu0 0.0
    %146 = vmatpush1.msra.mxu0 0.0
    %147 = vmatprep.subr.mxu0 0.0
    %148 = vmatpush1.msra.mxu0 0.0
    %149 = vmatprep.subr.mxu0 0.0
    %150 = vmatpush1.msra.mxu0 0.0
    %151 = vmatprep.subr.mxu0 0.0
    %152 = vmatpush1.msra.mxu0 0.0
    %153 = vmatprep.mubr.f32.mxu0 0.0
    %154 = vmatmul.mubr.f32.gmra.mrb[0].mxu0 %v84
    %v155 = vpop.f32.mrb[0].mxu0
    %v156 = vadd.f32 %v75, %v155
    %v157 = vpop.f32.mrb[0].mxu0
    %v158 = vadd.f32 %v79, %v157
    %159 = vmatprep.mubr.f32.mxu0 0.0
    %160 = vmatmul.mubr.f32.gmra.mrb[0].mxu0 %v87
    %v161 = vpop.f32.mrb[0].mxu0
    %v162 = vadd.f32 %v75, %v161
    %v163 = vpop.f32.mrb[0].mxu0
    %v164 = vadd.f32 %v79, %v163
    %165 = vdwg.mxu0
    %166 = vst [vmem:[#allocation2] sm:$0xff] %v156
    %167 = vst [vmem:[#allocation2 + $0x8] sm:$0xff] %v158
    %168 = vst [vmem:[#allocation2 + $0x10] sm:$0xff] %v162
    %169 = vst [vmem:[#allocation2 + $0x18] sm:$0xff] %v164
    %v170 = vld [vmem:[#allocation9] sm:$0xff]
    %v171 = vld [vmem:[#allocation9 + $0x8] sm:$0xff]
    %v172 = vld [vmem:[#allocation9 + $0x10] sm:$0xff]
    %v173 = vld [vmem:[#allocation9 + $0x18] sm:$0xff]
    %v174 = vld [vmem:[#allocation9 + $0x20] sm:$0xff]
    %v175 = vld [vmem:[#allocation9 + $0x28] sm:$0xff]
    %v176 = vld [vmem:[#allocation9 + $0x30] sm:$0xff]
    %v177 = vld [vmem:[#allocation9 + $0x38] sm:$0xff]
    %v178 = vld [vmem:[#allocation9 + $0x40] sm:$0xff]
    %v179 = vld [vmem:[#allocation9 + $0x48] sm:$0xff]
    %v180 = vld [vmem:[#allocation9 + $0x50] sm:$0xff]
    %v181 = vld [vmem:[#allocation9 + $0x58] sm:$0xff]
    %v182 = vld [vmem:[#allocation9 + $0x60] sm:$0xff]
    %v183 = vld [vmem:[#allocation9 + $0x68] sm:$0xff]
    %v184 = vld [vmem:[#allocation9 + $0x70] sm:$0xff]
    %v185 = vld [vmem:[#allocation9 + $0x78] sm:$0xff]
    %v186 = vld [vmem:[#allocation6] sm:$0xff]
    %v187 = vld [vmem:[#allocation6 + $0x8] sm:$0xff]
    %v188 = vld [vmem:[#allocation2] sm:$0x3]
    %v189 = vld [vmem:[#allocation2 + $0x8] sm:$0x3]
    %vm190 = vcmask 523264
    %v192 = vsel %vm190, 0.0, 0
    %194 = vmatprep.subr.mxu0 %v171
    %195 = vmatpush1.msra.mxu0 %v170
    %196 = vmatprep.subr.mxu0 %v173
    %197 = vmatpush1.msra.mxu0 %v172
    %198 = vmatprep.subr.mxu0 %v175
    %199 = vmatpush1.msra.mxu0 %v174
    %200 = vmatprep.subr.mxu0 %v177
    %201 = vmatpush1.msra.mxu0 %v176
    %202 = vmatprep.subr.mxu0 %v179
    %203 = vmatpush1.msra.mxu0 %v178
    %204 = vmatprep.subr.mxu0 %v181
    %205 = vmatpush1.msra.mxu0 %v180
    %206 = vmatprep.subr.mxu0 %v183
    %207 = vmatpush1.msra.mxu0 %v182
    %208 = vmatprep.subr.mxu0 %v185
    %209 = vmatpush1.msra.mxu0 %v184
    %210 = vmatprep.subr.mxu0 0.0
    %211 = vmatpush1.msra.mxu0 0.0
    %212 = vmatprep.subr.mxu0 0.0
    %213 = vmatpush1.msra.mxu0 0.0
    %214 = vmatprep.subr.mxu0 0.0
    %215 = vmatpush1.msra.mxu0 0.0
    %216 = vmatprep.subr.mxu0 0.0
    %217 = vmatpush1.msra.mxu0 0.0
    %218 = vmatprep.subr.mxu0 0.0
    %219 = vmatpush1.msra.mxu0 0.0
    %220 = vmatprep.subr.mxu0 0.0
    %221 = vmatpush1.msra.mxu0 0.0
    %222 = vmatprep.subr.mxu0 0.0
    %223 = vmatpush1.msra.mxu0 0.0
    %224 = vmatprep.subr.mxu0 0.0
    %225 = vmatpush1.msra.mxu0 0.0
    %226 = vmatprep.subr.mxu0 0.0
    %227 = vmatpush1.msra.mxu0 0.0
    %228 = vmatprep.subr.mxu0 0.0
    %229 = vmatpush1.msra.mxu0 0.0
    %230 = vmatprep.subr.mxu0 0.0
    %231 = vmatpush1.msra.mxu0 0.0
    %232 = vmatprep.subr.mxu0 0.0
    %233 = vmatpush1.msra.mxu0 0.0
    %234 = vmatprep.subr.mxu0 0.0
    %235 = vmatpush1.msra.mxu0 0.0
    %236 = vmatprep.subr.mxu0 0.0
    %237 = vmatpush1.msra.mxu0 0.0
    %238 = vmatprep.subr.mxu0 0.0
    %239 = vmatpush1.msra.mxu0 0.0
    %240 = vmatprep.subr.mxu0 0.0
    %241 = vmatpush1.msra.mxu0 0.0
    %242 = vmatprep.subr.mxu0 0.0
    %243 = vmatpush1.msra.mxu0 0.0
    %244 = vmatprep.subr.mxu0 0.0
    %245 = vmatpush1.msra.mxu0 0.0
    %246 = vmatprep.subr.mxu0 0.0
    %247 = vmatpush1.msra.mxu0 0.0
    %248 = vmatprep.subr.mxu0 0.0
    %249 = vmatpush1.msra.mxu0 0.0
    %250 = vmatprep.subr.mxu0 0.0
    %251 = vmatpush1.msra.mxu0 0.0
    %252 = vmatprep.subr.mxu0 0.0
    %253 = vmatpush1.msra.mxu0 0.0
    %254 = vmatprep.subr.mxu0 0.0
    %255 = vmatpush1.msra.mxu0 0.0
    %256 = vmatprep.subr.mxu0 0.0
    %257 = vmatpush1.msra.mxu0 0.0
    %258 = vmatprep.mubr.f32.mxu0 0.0
    %259 = vmatmul.mubr.f32.gmra.mrb[0].mxu0 %v192
    %v260 = vpop.f32.mrb[0].mxu0
    %v261 = vadd.f32 0.0, %v260
    %v262 = vpop.f32.mrb[0].mxu0
    %v263 = vadd.f32 0.0, %v262
    %264 = vdwg.mxu0
    %v265 = vadd.f32 %v188, %v261
    %v266 = vadd.f32 %v189, %v263
    %v267 = vxor.u32 %v265, 2147483648
    %v268 = vxor.u32 %v266, 2147483648
    %v269 = vmul.f32 %v267, 1.442695
    %v270 = vpow.pop %v269
    %v271 = vmul.f32 %v268, 1.442695
    %v272 = vpow.pop %v271
    %v273 = vadd.f32 %v270, 1.0
    %v274 = vadd.f32 %v272, 1.0
    %v275 = vrcp.pop %v273
    %v276 = vmul.f32 1.0, %v275
    %v277 = vrcp.pop %v274
    %v278 = vmul.f32 1.0, %v277
    %v279 = vtanh.pop %v266
    %v280 = vmul.f32 %v276, 0.0
    %v281 = vmul.f32 %v276, %v279
    %283 = vrot.lane.b32.xlu0 %v281, 64
    %v284 = vpop.permute.xlu0 %283
    %v286 = vadd.f32 %v280, %v284
    %v287 = vtanh.pop %v286
    %v288 = vmul.f32 %v278, %v287
    %290 = vrot.lane.b32.xlu0 %v288, 64
    %v291 = vpop.permute.xlu0 %290
    %vm293 = vcmask 254976
    %294 = vst.msk [vmem:[#allocation3] sm:$0x3] %vm293, %v291
    %295 = vrot.lane.b32.xlu0 %v288, 32
    %v296 = vpop.permute.xlu0 %295
    %298 = vst.msk [vmem:[#allocation4 + $0xe] sm:$0x3] %vm293, %v296
    %vm299 = vcmp.gt.f32.partialorder %v186, 0.5
    %v300 = vsel %vm299, %v291, 0.0
    %302 = vrot.lane.b32.xlu0 %v286, 64
    %v303 = vpop.permute.xlu0 %302
    %v305 = vsel %vm299, %v303, 0.0
    %v306 = vld [vmem:[#allocation2] sm:$0xc]
    %v307 = vld [vmem:[#allocation2 + $0x8] sm:$0xc]
    %v309 = vsel %vm190, %v300, 0
    %311 = vmatprep.subr.mxu0 %v171
    %312 = vmatpush1.msra.mxu0 %v170
    %313 = vmatprep.subr.mxu0 %v173
    %314 = vmatpush1.msra.mxu0 %v172
    %315 = vmatprep.subr.mxu0 %v175
    %316 = vmatpush1.msra.mxu0 %v174
    %317 = vmatprep.subr.mxu0 %v177
    %318 = vmatpush1.msra.mxu0 %v176
    %319 = vmatprep.subr.mxu0 %v179
    %320 = vmatpush1.msra.mxu0 %v178
    %321 = vmatprep.subr.mxu0 %v181
    %322 = vmatpush1.msra.mxu0 %v180
    %323 = vmatprep.subr.mxu0 %v183
    %324 = vmatpush1.msra.mxu0 %v182
    %325 = vmatprep.subr.mxu0 %v185
    %326 = vmatpush1.msra.mxu0 %v184
    %327 = vmatprep.subr.mxu0 0.0
    %328 = vmatpush1.msra.mxu0 0.0
    %329 = vmatprep.subr.mxu0 0.0
    %330 = vmatpush1.msra.mxu0 0.0
    %331 = vmatprep.subr.mxu0 0.0
    %332 = vmatpush1.msra.mxu0 0.0
    %333 = vmatprep.subr.mxu0 0.0
    %334 = vmatpush1.msra.mxu0 0.0
    %335 = vmatprep.subr.mxu0 0.0
    %336 = vmatpush1.msra.mxu0 0.0
    %337 = vmatprep.subr.mxu0 0.0
    %338 = vmatpush1.msra.mxu0 0.0
    %339 = vmatprep.subr.mxu0 0.0
    %340 = vmatpush1.msra.mxu0 0.0
    %341 = vmatprep.subr.mxu0 0.0
    %342 = vmatpush1.msra.mxu0 0.0
    %343 = vmatprep.subr.mxu0 0.0
    %344 = vmatpush1.msra.mxu0 0.0
    %345 = vmatprep.subr.mxu0 0.0
    %346 = vmatpush1.msra.mxu0 0.0
    %347 = vmatprep.subr.mxu0 0.0
    %348 = vmatpush1.msra.mxu0 0.0
    %349 = vmatprep.subr.mxu0 0.0
    %350 = vmatpush1.msra.mxu0 0.0
    %351 = vmatprep.subr.mxu0 0.0
    %352 = vmatpush1.msra.mxu0 0.0
    %353 = vmatprep.subr.mxu0 0.0
    %354 = vmatpush1.msra.mxu0 0.0
    %355 = vmatprep.subr.mxu0 0.0
    %356 = vmatpush1.msra.mxu0 0.0
    %357 = vmatprep.subr.mxu0 0.0
    %358 = vmatpush1.msra.mxu0 0.0
    %359 = vmatprep.subr.mxu0 0.0
    %360 = vmatpush1.msra.mxu0 0.0
    %361 = vmatprep.subr.mxu0 0.0
    %362 = vmatpush1.msra.mxu0 0.0
    %363 = vmatprep.subr.mxu0 0.0
    %364 = vmatpush1.msra.mxu0 0.0
    %365 = vmatprep.subr.mxu0 0.0
    %366 = vmatpush1.msra.mxu0 0.0
    %367 = vmatprep.subr.mxu0 0.0
    %368 = vmatpush1.msra.mxu0 0.0
    %369 = vmatprep.subr.mxu0 0.0
    %370 = vmatpush1.msra.mxu0 0.0
    %371 = vmatprep.subr.mxu0 0.0
    %372 = vmatpush1.msra.mxu0 0.0
    %373 = vmatprep.subr.mxu0 0.0
    %374 = vmatpush1.msra.mxu0 0.0
    %375 = vmatprep.mubr.f32.mxu0 0.0
    %376 = vmatmul.mubr.f32.gmra.mrb[0].mxu0 %v309
    %v377 = vpop.f32.mrb[0].mxu0
    %v378 = vadd.f32 0.0, %v377
    %v379 = vpop.f32.mrb[0].mxu0
    %v380 = vadd.f32 0.0, %v379
    %381 = vdwg.mxu0
    %v384 = vrot.slane %v378, 6
    %v385 = vrot.slane %v380, 6
    %v388 = vadd.f32 %v306, %v384
    %v389 = vadd.f32 %v307, %v385
    %v390 = vxor.u32 %v388, 2147483648
    %v391 = vxor.u32 %v389, 2147483648
    %v392 = vmul.f32 %v390, 1.442695
    %v393 = vpow.pop %v392
    %v394 = vmul.f32 %v391, 1.442695
    %v395 = vpow.pop %v394
    %v396 = vadd.f32 %v393, 1.0
    %v397 = vadd.f32 %v395, 1.0
    %v398 = vrcp.pop %v396
    %v399 = vmul.f32 1.0, %v398
    %v400 = vrcp.pop %v397
    %v401 = vmul.f32 1.0, %v400
    %v402 = vtanh.pop %v389
    %v404 = vrot.slane %v305, 6
    %405 = vrot.lane.b32.xlu0 %v404, 64
    %v406 = vpop.permute.xlu0 %405
    %v408 = vmul.f32 %v399, %v406
    %v409 = vmul.f32 %v399, %v402
    %411 = vrot.lane.b32.xlu0 %v409, 64
    %v412 = vpop.permute.xlu0 %411
    %v414 = vadd.f32 %v408, %v412
    %v415 = vtanh.pop %v414
    %v416 = vmul.f32 %v401, %v415
    %418 = vrot.lane.b32.xlu0 %v416, 64
    %v419 = vpop.permute.xlu0 %418
    %vm421 = vcmask 257026
    %422 = vst.msk [vmem:[#allocation3] sm:$0xc] %vm421, %v419
    %423 = vrot.lane.b32.xlu0 %v416, 32
    %v424 = vpop.permute.xlu0 %423
    %426 = vst.msk [vmem:[#allocation4 + $0xa] sm:$0xc] %vm421, %v424
    %v427 = vrot.slane %v300, 6
    %v429 = vsel %vm299, %v419, %v427
    %431 = vrot.lane.b32.xlu0 %v414, 64
    %v432 = vpop.permute.xlu0 %431
    %v435 = vsel %vm299, %v432, %v404
    %v436 = vld [vmem:[#allocation2] sm:$0x30]
    %v437 = vld [vmem:[#allocation2 + $0x8] sm:$0x30]
    %v439 = vrot.slane %v429, 2
    %v440 = vsel %vm190, %v439, 0
    %442 = vmatprep.subr.mxu0 %v171
    %443 = vmatpush1.msra.mxu0 %v170
    %444 = vmatprep.subr.mxu0 %v173
    %445 = vmatpush1.msra.mxu0 %v172
    %446 = vmatprep.subr.mxu0 %v175
    %447 = vmatpush1.msra.mxu0 %v174
    %448 = vmatprep.subr.mxu0 %v177
    %449 = vmatpush1.msra.mxu0 %v176
    %450 = vmatprep.subr.mxu0 %v179
    %451 = vmatpush1.msra.mxu0 %v178
    %452 = vmatprep.subr.mxu0 %v181
    %453 = vmatpush1.msra.mxu0 %v180
    %454 = vmatprep.subr.mxu0 %v183
    %455 = vmatpush1.msra.mxu0 %v182
    %456 = vmatprep.subr.mxu0 %v185
    %457 = vmatpush1.msra.mxu0 %v184
    %458 = vmatprep.subr.mxu0 0.0
    %459 = vmatpush1.msra.mxu0 0.0
    %460 = vmatprep.subr.mxu0 0.0
    %461 = vmatpush1.msra.mxu0 0.0
    %462 = vmatprep.subr.mxu0 0.0
    %463 = vmatpush1.msra.mxu0 0.0
    %464 = vmatprep.subr.mxu0 0.0
    %465 = vmatpush1.msra.mxu0 0.0
    %466 = vmatprep.subr.mxu0 0.0
    %467 = vmatpush1.msra.mxu0 0.0
    %468 = vmatprep.subr.mxu0 0.0
    %469 = vmatpush1.msra.mxu0 0.0
    %470 = vmatprep.subr.mxu0 0.0
    %471 = vmatpush1.msra.mxu0 0.0
    %472 = vmatprep.subr.mxu0 0.0
    %473 = vmatpush1.msra.mxu0 0.0
    %474 = vmatprep.subr.mxu0 0.0
    %475 = vmatpush1.msra.mxu0 0.0
    %476 = vmatprep.subr.mxu0 0.0
    %477 = vmatpush1.msra.mxu0 0.0
    %478 = vmatprep.subr.mxu0 0.0
    %479 = vmatpush1.msra.mxu0 0.0
    %480 = vmatprep.subr.mxu0 0.0
    %481 = vmatpush1.msra.mxu0 0.0
    %482 = vmatprep.subr.mxu0 0.0
    %483 = vmatpush1.msra.mxu0 0.0
    %484 = vmatprep.subr.mxu0 0.0
    %485 = vmatpush1.msra.mxu0 0.0
    %486 = vmatprep.subr.mxu0 0.0
    %487 = vmatpush1.msra.mxu0 0.0
    %488 = vmatprep.subr.mxu0 0.0
    %489 = vmatpush1.msra.mxu0 0.0
    %490 = vmatprep.subr.mxu0 0.0
    %491 = vmatpush1.msra.mxu0 0.0
    %492 = vmatprep.subr.mxu0 0.0
    %493 = vmatpush1.msra.mxu0 0.0
    %494 = vmatprep.subr.mxu0 0.0
    %495 = vmatpush1.msra.mxu0 0.0
    %496 = vmatprep.subr.mxu0 0.0
    %497 = vmatpush1.msra.mxu0 0.0
    %498 = vmatprep.subr.mxu0 0.0
    %499 = vmatpush1.msra.mxu0 0.0
    %500 = vmatprep.subr.mxu0 0.0
    %501 = vmatpush1.msra.mxu0 0.0
    %502 = vmatprep.subr.mxu0 0.0
    %503 = vmatpush1.msra.mxu0 0.0
    %504 = vmatprep.subr.mxu0 0.0
    %505 = vmatpush1.msra.mxu0 0.0
    %506 = vmatprep.mubr.f32.mxu0 0.0
    %507 = vmatmul.mubr.f32.gmra.mrb[0].mxu0 %v440
    %v508 = vpop.f32.mrb[0].mxu0
    %v509 = vadd.f32 0.0, %v508
    %v510 = vpop.f32.mrb[0].mxu0
    %v511 = vadd.f32 0.0, %v510
    %512 = vdwg.mxu0
    %v515 = vrot.slane %v509, 4
    %v516 = vrot.slane %v511, 4
    %v519 = vadd.f32 %v436, %v515
    %v520 = vadd.f32 %v437, %v516
    %v521 = vxor.u32 %v519, 2147483648
    %v522 = vxor.u32 %v520, 2147483648
    %v523 = vmul.f32 %v521, 1.442695
    %v524 = vpow.pop %v523
    %v525 = vmul.f32 %v522, 1.442695
    %v526 = vpow.pop %v525
    %v527 = vadd.f32 %v524, 1.0
    %v528 = vadd.f32 %v526, 1.0
    %v529 = vrcp.pop %v527
    %v530 = vmul.f32 1.0, %v529
    %v531 = vrcp.pop %v528
    %v532 = vmul.f32 1.0, %v531
    %v533 = vtanh.pop %v520
    %v535 = vrot.slane %v435, 6
    %536 = vrot.lane.b32.xlu0 %v535, 64
    %v537 = vpop.permute.xlu0 %536
    %v539 = vmul.f32 %v530, %v537
    %v540 = vmul.f32 %v530, %v533
    %542 = vrot.lane.b32.xlu0 %v540, 64
    %v543 = vpop.permute.xlu0 %542
    %v545 = vadd.f32 %v539, %v543
    %v546 = vtanh.pop %v545
    %v547 = vmul.f32 %v532, %v546
    %549 = vrot.lane.b32.xlu0 %v547, 64
    %v550 = vpop.permute.xlu0 %549
    %vm552 = vcmask 259076
    %553 = vst.msk [vmem:[#allocation3] sm:$0x30] %vm552, %v550
    %554 = vrot.lane.b32.xlu0 %v547, 32
    %v555 = vpop.permute.xlu0 %554
    %557 = vst.msk [vmem:[#allocation4 + $0x6] sm:$0x30] %vm552, %v555
    %v558 = vrot.slane %v429, 6
    %v560 = vsel %vm299, %v550, %v558
    %562 = vrot.lane.b32.xlu0 %v545, 64
    %v563 = vpop.permute.xlu0 %562
    %v566 = vsel %vm299, %v563, %v535
    %v567 = vld [vmem:[#allocation2] sm:$0xc0]
    %v568 = vld [vmem:[#allocation2 + $0x8] sm:$0xc0]
    %v570 = vrot.slane %v560, 4
    %v571 = vsel %vm190, %v570, 0
    %573 = vmatprep.subr.mxu0 %v171
    %574 = vmatpush1.msra.mxu0 %v170
    %575 = vmatprep.subr.mxu0 %v173
    %576 = vmatpush1.msra.mxu0 %v172
    %577 = vmatprep.subr.mxu0 %v175
    %578 = vmatpush1.msra.mxu0 %v174
    %579 = vmatprep.subr.mxu0 %v177
    %580 = vmatpush1.msra.mxu0 %v176
    %581 = vmatprep.subr.mxu0 %v179
    %582 = vmatpush1.msra.mxu0 %v178
    %583 = vmatprep.subr.mxu0 %v181
    %584 = vmatpush1.msra.mxu0 %v180
    %585 = vmatprep.subr.mxu0 %v183
    %586 = vmatpush1.msra.mxu0 %v182
    %587 = vmatprep.subr.mxu0 %v185
    %588 = vmatpush1.msra.mxu0 %v184
    %589 = vmatprep.subr.mxu0 0.0
    %590 = vmatpush1.msra.mxu0 0.0
    %591 = vmatprep.subr.mxu0 0.0
    %592 = vmatpush1.msra.mxu0 0.0
    %593 = vmatprep.subr.mxu0 0.0
    %594 = vmatpush1.msra.mxu0 0.0
    %595 = vmatprep.subr.mxu0 0.0
    %596 = vmatpush1.msra.mxu0 0.0
    %597 = vmatprep.subr.mxu0 0.0
    %598 = vmatpush1.msra.mxu0 0.0
    %599 = vmatprep.subr.mxu0 0.0
    %600 = vmatpush1.msra.mxu0 0.0
    %601 = vmatprep.subr.mxu0 0.0
    %602 = vmatpush1.msra.mxu0 0.0
    %603 = vmatprep.subr.mxu0 0.0
    %604 = vmatpush1.msra.mxu0 0.0
    %605 = vmatprep.subr.mxu0 0.0
    %606 = vmatpush1.msra.mxu0 0.0
    %607 = vmatprep.subr.mxu0 0.0
    %608 = vmatpush1.msra.mxu0 0.0
    %609 = vmatprep.subr.mxu0 0.0
    %610 = vmatpush1.msra.mxu0 0.0
    %611 = vmatprep.subr.mxu0 0.0
    %612 = vmatpush1.msra.mxu0 0.0
    %613 = vmatprep.subr.mxu0 0.0
    %614 = vmatpush1.msra.mxu0 0.0
    %615 = vmatprep.subr.mxu0 0.0
    %616 = vmatpush1.msra.mxu0 0.0
    %617 = vmatprep.subr.mxu0 0.0
    %618 = vmatpush1.msra.mxu0 0.0
    %619 = vmatprep.subr.mxu0 0.0
    %620 = vmatpush1.msra.mxu0 0.0
    %621 = vmatprep.subr.mxu0 0.0
    %622 = vmatpush1.msra.mxu0 0.0
    %623 = vmatprep.subr.mxu0 0.0
    %624 = vmatpush1.msra.mxu0 0.0
    %625 = vmatprep.subr.mxu0 0.0
    %626 = vmatpush1.msra.mxu0 0.0
    %627 = vmatprep.subr.mxu0 0.0
    %628 = vmatpush1.msra.mxu0 0.0
    %629 = vmatprep.subr.mxu0 0.0
    %630 = vmatpush1.msra.mxu0 0.0
    %631 = vmatprep.subr.mxu0 0.0
    %632 = vmatpush1.msra.mxu0 0.0
    %633 = vmatprep.subr.mxu0 0.0
    %634 = vmatpush1.msra.mxu0 0.0
    %635 = vmatprep.subr.mxu0 0.0
    %636 = vmatpush1.msra.mxu0 0.0
    %637 = vmatprep.mubr.f32.mxu0 0.0
    %638 = vmatmul.mubr.f32.gmra.mrb[0].mxu0 %v571
    %v639 = vpop.f32.mrb[0].mxu0
    %v640 = vadd.f32 0.0, %v639
    %v641 = vpop.f32.mrb[0].mxu0
    %v642 = vadd.f32 0.0, %v641
    %643 = vdwg.mxu0
    %v646 = vrot.slane %v640, 2
    %v647 = vrot.slane %v642, 2
    %v650 = vadd.f32 %v567, %v646
    %v651 = vadd.f32 %v568, %v647
    %v652 = vxor.u32 %v650, 2147483648
    %v653 = vxor.u32 %v651, 2147483648
    %v654 = vmul.f32 %v652, 1.442695
    %v655 = vpow.pop %v654
    %v656 = vmul.f32 %v653, 1.442695
    %v657 = vpow.pop %v656
    %v658 = vadd.f32 %v655, 1.0
    %v659 = vadd.f32 %v657, 1.0
    %v660 = vrcp.pop %v658
    %v661 = vmul.f32 1.0, %v660
    %v662 = vrcp.pop %v659
    %v663 = vmul.f32 1.0, %v662
    %v664 = vtanh.pop %v651
    %v666 = vrot.slane %v566, 6
    %667 = vrot.lane.b32.xlu0 %v666, 64
    %v668 = vpop.permute.xlu0 %667
    %v670 = vmul.f32 %v661, %v668
    %v671 = vmul.f32 %v661, %v664
    %673 = vrot.lane.b32.xlu0 %v671, 64
    %v674 = vpop.permute.xlu0 %673
    %v676 = vadd.f32 %v670, %v674
    %v677 = vtanh.pop %v676
    %v678 = vmul.f32 %v663, %v677
    %680 = vrot.lane.b32.xlu0 %v678, 64
    %v681 = vpop.permute.xlu0 %680
    %vm683 = vcmask 261126
    %684 = vst.msk [vmem:[#allocation3] sm:$0xc0] %vm683, %v681
    %685 = vrot.lane.b32.xlu0 %v678, 32
    %v686 = vpop.permute.xlu0 %685
    %688 = vst.msk [vmem:[#allocation4 + $0x2] sm:$0xc0] %vm683, %v686
    %v689 = vrot.slane %v560, 6
    %v691 = vsel %vm299, %v681, %v689
    %693 = vrot.lane.b32.xlu0 %v676, 64
    %v694 = vpop.permute.xlu0 %693
    %v697 = vsel %vm299, %v694, %v666
    %v698 = vld [vmem:[#allocation2 + $0x10] sm:$0x3]
    %v699 = vld [vmem:[#allocation2 + $0x18] sm:$0x3]
    %v701 = vrot.slane %v691, 6
    %v702 = vsel %vm190, %v701, 0
    %704 = vmatprep.subr.mxu0 %v171
    %705 = vmatpush1.msra.mxu0 %v170
    %706 = vmatprep.subr.mxu0 %v173
    %707 = vmatpush1.msra.mxu0 %v172
    %708 = vmatprep.subr.mxu0 %v175
    %709 = vmatpush1.msra.mxu0 %v174
    %710 = vmatprep.subr.mxu0 %v177
    %711 = vmatpush1.msra.mxu0 %v176
    %712 = vmatprep.subr.mxu0 %v179
    %713 = vmatpush1.msra.mxu0 %v178
    %714 = vmatprep.subr.mxu0 %v181
    %715 = vmatpush1.msra.mxu0 %v180
    %716 = vmatprep.subr.mxu0 %v183
    %717 = vmatpush1.msra.mxu0 %v182
    %718 = vmatprep.subr.mxu0 %v185
    %719 = vmatpush1.msra.mxu0 %v184
    %720 = vmatprep.subr.mxu0 0.0
    %721 = vmatpush1.msra.mxu0 0.0
    %722 = vmatprep.subr.mxu0 0.0
    %723 = vmatpush1.msra.mxu0 0.0
    %724 = vmatprep.subr.mxu0 0.0
    %725 = vmatpush1.msra.mxu0 0.0
    %726 = vmatprep.subr.mxu0 0.0
    %727 = vmatpush1.msra.mxu0 0.0
    %728 = vmatprep.subr.mxu0 0.0
    %729 = vmatpush1.msra.mxu0 0.0
    %730 = vmatprep.subr.mxu0 0.0
    %731 = vmatpush1.msra.mxu0 0.0
    %732 = vmatprep.subr.mxu0 0.0
    %733 = vmatpush1.msra.mxu0 0.0
    %734 = vmatprep.subr.mxu0 0.0
    %735 = vmatpush1.msra.mxu0 0.0
    %736 = vmatprep.subr.mxu0 0.0
    %737 = vmatpush1.msra.mxu0 0.0
    %738 = vmatprep.subr.mxu0 0.0
    %739 = vmatpush1.msra.mxu0 0.0
    %740 = vmatprep.subr.mxu0 0.0
    %741 = vmatpush1.msra.mxu0 0.0
    %742 = vmatprep.subr.mxu0 0.0
    %743 = vmatpush1.msra.mxu0 0.0
    %744 = vmatprep.subr.mxu0 0.0
    %745 = vmatpush1.msra.mxu0 0.0
    %746 = vmatprep.subr.mxu0 0.0
    %747 = vmatpush1.msra.mxu0 0.0
    %748 = vmatprep.subr.mxu0 0.0
    %749 = vmatpush1.msra.mxu0 0.0
    %750 = vmatprep.subr.mxu0 0.0
    %751 = vmatpush1.msra.mxu0 0.0
    %752 = vmatprep.subr.mxu0 0.0
    %753 = vmatpush1.msra.mxu0 0.0
    %754 = vmatprep.subr.mxu0 0.0
    %755 = vmatpush1.msra.mxu0 0.0
    %756 = vmatprep.subr.mxu0 0.0
    %757 = vmatpush1.msra.mxu0 0.0
    %758 = vmatprep.subr.mxu0 0.0
    %759 = vmatpush1.msra.mxu0 0.0
    %760 = vmatprep.subr.mxu0 0.0
    %761 = vmatpush1.msra.mxu0 0.0
    %762 = vmatprep.subr.mxu0 0.0
    %763 = vmatpush1.msra.mxu0 0.0
    %764 = vmatprep.subr.mxu0 0.0
    %765 = vmatpush1.msra.mxu0 0.0
    %766 = vmatprep.subr.mxu0 0.0
    %767 = vmatpush1.msra.mxu0 0.0
    %768 = vmatprep.mubr.f32.mxu0 0.0
    %769 = vmatmul.mubr.f32.gmra.mrb[0].mxu0 %v702
    %v770 = vpop.f32.mrb[0].mxu0
    %v771 = vadd.f32 0.0, %v770
    %v772 = vpop.f32.mrb[0].mxu0
    %v773 = vadd.f32 0.0, %v772
    %774 = vdwg.mxu0
    %v775 = vadd.f32 %v698, %v771
    %v776 = vadd.f32 %v699, %v773
    %v777 = vxor.u32 %v775, 2147483648
    %v778 = vxor.u32 %v776, 2147483648
    %v779 = vmul.f32 %v777, 1.442695
    %v780 = vpow.pop %v779
    %v781 = vmul.f32 %v778, 1.442695
    %v782 = vpow.pop %v781
    %v783 = vadd.f32 %v780, 1.0
    %v784 = vadd.f32 %v782, 1.0
    %v785 = vrcp.pop %v783
    %v786 = vmul.f32 1.0, %v785
    %v787 = vrcp.pop %v784
    %v788 = vmul.f32 1.0, %v787
    %v789 = vtanh.pop %v776
    %v791 = vrot.slane %v697, 6
    %792 = vrot.lane.b32.xlu0 %v791, 64
    %v793 = vpop.permute.xlu0 %792
    %v795 = vmul.f32 %v786, %v793
    %v796 = vmul.f32 %v786, %v789
    %798 = vrot.lane.b32.xlu0 %v796, 64
    %v799 = vpop.permute.xlu0 %798
    %v801 = vadd.f32 %v795, %v799
    %v802 = vtanh.pop %v801
    %v803 = vmul.f32 %v788, %v802
    %805 = vrot.lane.b32.xlu0 %v803, 64
    %v806 = vpop.permute.xlu0 %805
    %808 = vst.msk [vmem:[#allocation3 + $0x8] sm:$0x3] %vm293, %v806
    %809 = vrot.lane.b32.xlu0 %v803, 32
    %v810 = vpop.permute.xlu0 %809
    %812 = vst.msk [vmem:[#allocation4 + $0x6] sm:$0x3] %vm293, %v810
    %vm813 = vcmp.gt.f32.partialorder %v187, 0.5
    %v815 = vsel %vm813, %v806, %v701
    %817 = vrot.lane.b32.xlu0 %v801, 64
    %v818 = vpop.permute.xlu0 %817
    %v821 = vsel %vm813, %v818, %v791
    %v822 = vld [vmem:[#allocation2 + $0x10] sm:$0xc]
    %v823 = vld [vmem:[#allocation2 + $0x18] sm:$0xc]
    %v825 = vsel %vm190, %v815, 0
    %827 = vmatprep.subr.mxu0 %v171
    %828 = vmatpush1.msra.mxu0 %v170
    %829 = vmatprep.subr.mxu0 %v173
    %830 = vmatpush1.msra.mxu0 %v172
    %831 = vmatprep.subr.mxu0 %v175
    %832 = vmatpush1.msra.mxu0 %v174
    %833 = vmatprep.subr.mxu0 %v177
    %834 = vmatpush1.msra.mxu0 %v176
    %835 = vmatprep.subr.mxu0 %v179
    %836 = vmatpush1.msra.mxu0 %v178
    %837 = vmatprep.subr.mxu0 %v181
    %838 = vmatpush1.msra.mxu0 %v180
    %839 = vmatprep.subr.mxu0 %v183
    %840 = vmatpush1.msra.mxu0 %v182
    %841 = vmatprep.subr.mxu0 %v185
    %842 = vmatpush1.msra.mxu0 %v184
    %843 = vmatprep.subr.mxu0 0.0
    %844 = vmatpush1.msra.mxu0 0.0
    %845 = vmatprep.subr.mxu0 0.0
    %846 = vmatpush1.msra.mxu0 0.0
    %847 = vmatprep.subr.mxu0 0.0
    %848 = vmatpush1.msra.mxu0 0.0
    %849 = vmatprep.subr.mxu0 0.0
    %850 = vmatpush1.msra.mxu0 0.0
    %851 = vmatprep.subr.mxu0 0.0
    %852 = vmatpush1.msra.mxu0 0.0
    %853 = vmatprep.subr.mxu0 0.0
    %854 = vmatpush1.msra.mxu0 0.0
    %855 = vmatprep.subr.mxu0 0.0
    %856 = vmatpush1.msra.mxu0 0.0
    %857 = vmatprep.subr.mxu0 0.0
    %858 = vmatpush1.msra.mxu0 0.0
    %859 = vmatprep.subr.mxu0 0.0
    %860 = vmatpush1.msra.mxu0 0.0
    %861 = vmatprep.subr.mxu0 0.0
    %862 = vmatpush1.msra.mxu0 0.0
    %863 = vmatprep.subr.mxu0 0.0
    %864 = vmatpush1.msra.mxu0 0.0
    %865 = vmatprep.subr.mxu0 0.0
    %866 = vmatpush1.msra.mxu0 0.0
    %867 = vmatprep.subr.mxu0 0.0
    %868 = vmatpush1.msra.mxu0 0.0
    %869 = vmatprep.subr.mxu0 0.0
    %870 = vmatpush1.msra.mxu0 0.0
    %871 = vmatprep.subr.mxu0 0.0
    %872 = vmatpush1.msra.mxu0 0.0
    %873 = vmatprep.subr.mxu0 0.0
    %874 = vmatpush1.msra.mxu0 0.0
    %875 = vmatprep.subr.mxu0 0.0
    %876 = vmatpush1.msra.mxu0 0.0
    %877 = vmatprep.subr.mxu0 0.0
    %878 = vmatpush1.msra.mxu0 0.0
    %879 = vmatprep.subr.mxu0 0.0
    %880 = vmatpush1.msra.mxu0 0.0
    %881 = vmatprep.subr.mxu0 0.0
    %882 = vmatpush1.msra.mxu0 0.0
    %883 = vmatprep.subr.mxu0 0.0
    %884 = vmatpush1.msra.mxu0 0.0
    %885 = vmatprep.subr.mxu0 0.0
    %886 = vmatpush1.msra.mxu0 0.0
    %887 = vmatprep.subr.mxu0 0.0
    %888 = vmatpush1.msra.mxu0 0.0
    %889 = vmatprep.subr.mxu0 0.0
    %890 = vmatpush1.msra.mxu0 0.0
    %891 = vmatprep.mubr.f32.mxu0 0.0
    %892 = vmatmul.mubr.f32.gmra.mrb[0].mxu0 %v825
    %v893 = vpop.f32.mrb[0].mxu0
    %v894 = vadd.f32 0.0, %v893
    %v895 = vpop.f32.mrb[0].mxu0
    %v896 = vadd.f32 0.0, %v895
    %897 = vdwg.mxu0
    %v900 = vrot.slane %v894, 6
    %v901 = vrot.slane %v896, 6
    %v904 = vadd.f32 %v822, %v900
    %v905 = vadd.f32 %v823, %v901
    %v906 = vxor.u32 %v904, 2147483648
    %v907 = vxor.u32 %v905, 2147483648
    %v908 = vmul.f32 %v906, 1.442695
    %v909 = vpow.pop %v908
    %v910 = vmul.f32 %v907, 1.442695
    %v911 = vpow.pop %v910
    %v912 = vadd.f32 %v909, 1.0
    %v913 = vadd.f32 %v911, 1.0
    %v914 = vrcp.pop %v912
    %v915 = vmul.f32 1.0, %v914
    %v916 = vrcp.pop %v913
    %v917 = vmul.f32 1.0, %v916
    %v918 = vtanh.pop %v905
    %v920 = vrot.slane %v821, 6
    %921 = vrot.lane.b32.xlu0 %v920, 64
    %v922 = vpop.permute.xlu0 %921
    %v924 = vmul.f32 %v915, %v922
    %v925 = vmul.f32 %v915, %v918
    %927 = vrot.lane.b32.xlu0 %v925, 64
    %v928 = vpop.permute.xlu0 %927
    %v930 = vadd.f32 %v924, %v928
    %v931 = vtanh.pop %v930
    %v932 = vmul.f32 %v917, %v931
    %934 = vrot.lane.b32.xlu0 %v932, 64
    %v935 = vpop.permute.xlu0 %934
    %937 = vst.msk [vmem:[#allocation3 + $0x8] sm:$0xc] %vm421, %v935
    %938 = vrot.lane.b32.xlu0 %v932, 32
    %v939 = vpop.permute.xlu0 %938
    %941 = vst.msk [vmem:[#allocation4 + $0x2] sm:$0xc] %vm421, %v939
    %v942 = vrot.slane %v815, 6
    %v944 = vsel %vm813, %v935, %v942
    %946 = vrot.lane.b32.xlu0 %v930, 64
    %v947 = vpop.permute.xlu0 %946
    %v950 = vsel %vm813, %v947, %v920
    %v951 = vld [vmem:[#allocation2 + $0x10] sm:$0x30]
    %v952 = vld [vmem:[#allocation2 + $0x18] sm:$0x30]
    %v954 = vrot.slane %v944, 2
    %v955 = vsel %vm190, %v954, 0
    %957 = vmatprep.subr.mxu0 %v171
    %958 = vmatpush1.msra.mxu0 %v170
    %959 = vmatprep.subr.mxu0 %v173
    %960 = vmatpush1.msra.mxu0 %v172
    %961 = vmatprep.subr.mxu0 %v175
    %962 = vmatpush1.msra.mxu0 %v174
    %963 = vmatprep.subr.mxu0 %v177
    %964 = vmatpush1.msra.mxu0 %v176
    %965 = vmatprep.subr.mxu0 %v179
    %966 = vmatpush1.msra.mxu0 %v178
    %967 = vmatprep.subr.mxu0 %v181
    %968 = vmatpush1.msra.mxu0 %v180
    %969 = vmatprep.subr.mxu0 %v183
    %970 = vmatpush1.msra.mxu0 %v182
    %971 = vmatprep.subr.mxu0 %v185
    %972 = vmatpush1.msra.mxu0 %v184
    %973 = vmatprep.subr.mxu0 0.0
    %974 = vmatpush1.msra.mxu0 0.0
    %975 = vmatprep.subr.mxu0 0.0
    %976 = vmatpush1.msra.mxu0 0.0
    %977 = vmatprep.subr.mxu0 0.0
    %978 = vmatpush1.msra.mxu0 0.0
    %979 = vmatprep.subr.mxu0 0.0
    %980 = vmatpush1.msra.mxu0 0.0
    %981 = vmatprep.subr.mxu0 0.0
    %982 = vmatpush1.msra.mxu0 0.0
    %983 = vmatprep.subr.mxu0 0.0
    %984 = vmatpush1.msra.mxu0 0.0
    %985 = vmatprep.subr.mxu0 0.0
    %986 = vmatpush1.msra.mxu0 0.0
    %987 = vmatprep.subr.mxu0 0.0
    %988 = vmatpush1.msra.mxu0 0.0
    %989 = vmatprep.subr.mxu0 0.0
    %990 = vmatpush1.msra.mxu0 0.0
    %991 = vmatprep.subr.mxu0 0.0
    %992 = vmatpush1.msra.mxu0 0.0
    %993 = vmatprep.subr.mxu0 0.0
    %994 = vmatpush1.msra.mxu0 0.0
    %995 = vmatprep.subr.mxu0 0.0
    %996 = vmatpush1.msra.mxu0 0.0
    %997 = vmatprep.subr.mxu0 0.0
    %998 = vmatpush1.msra.mxu0 0.0
    %999 = vmatprep.subr.mxu0 0.0
    %1000 = vmatpush1.msra.mxu0 0.0
    %1001 = vmatprep.subr.mxu0 0.0
    %1002 = vmatpush1.msra.mxu0 0.0
    %1003 = vmatprep.subr.mxu0 0.0
    %1004 = vmatpush1.msra.mxu0 0.0
    %1005 = vmatprep.subr.mxu0 0.0
    %1006 = vmatpush1.msra.mxu0 0.0
    %1007 = vmatprep.subr.mxu0 0.0
    %1008 = vmatpush1.msra.mxu0 0.0
    %1009 = vmatprep.subr.mxu0 0.0
    %1010 = vmatpush1.msra.mxu0 0.0
    %1011 = vmatprep.subr.mxu0 0.0
    %1012 = vmatpush1.msra.mxu0 0.0
    %1013 = vmatprep.subr.mxu0 0.0
    %1014 = vmatpush1.msra.mxu0 0.0
    %1015 = vmatprep.subr.mxu0 0.0
    %1016 = vmatpush1.msra.mxu0 0.0
    %1017 = vmatprep.subr.mxu0 0.0
    %1018 = vmatpush1.msra.mxu0 0.0
    %1019 = vmatprep.subr.mxu0 0.0
    %1020 = vmatpush1.msra.mxu0 0.0
    %1021 = vmatprep.mubr.f32.mxu0 0.0
    %1022 = vmatmul.mubr.f32.gmra.mrb[0].mxu0 %v955
    %v1023 = vpop.f32.mrb[0].mxu0
    %v1024 = vadd.f32 0.0, %v1023
    %v1025 = vpop.f32.mrb[0].mxu0
    %v1026 = vadd.f32 0.0, %v1025
    %1027 = vdwg.mxu0
    %v1030 = vrot.slane %v1024, 4
    %v1031 = vrot.slane %v1026, 4
    %v1034 = vadd.f32 %v951, %v1030
    %v1035 = vadd.f32 %v952, %v1031
    %v1036 = vxor.u32 %v1034, 2147483648
    %v1037 = vxor.u32 %v1035, 2147483648
    %v1038 = vmul.f32 %v1036, 1.442695
    %v1039 = vpow.pop %v1038
    %v1040 = vmul.f32 %v1037, 1.442695
    %v1041 = vpow.pop %v1040
    %v1042 = vadd.f32 %v1039, 1.0
    %v1043 = vadd.f32 %v1041, 1.0
    %v1044 = vrcp.pop %v1042
    %v1045 = vmul.f32 1.0, %v1044
    %v1046 = vrcp.pop %v1043
    %v1047 = vmul.f32 1.0, %v1046
    %v1048 = vtanh.pop %v1035
    %v1050 = vrot.slane %v950, 6
    %1051 = vrot.lane.b32.xlu0 %v1050, 64
    %v1052 = vpop.permute.xlu0 %1051
    %v1054 = vmul.f32 %v1045, %v1052
    %v1055 = vmul.f32 %v1045, %v1048
    %1057 = vrot.lane.b32.xlu0 %v1055, 64
    %v1058 = vpop.permute.xlu0 %1057
    %v1060 = vadd.f32 %v1054, %v1058
    %v1061 = vtanh.pop %v1060
    %v1062 = vmul.f32 %v1047, %v1061
    %1064 = vrot.lane.b32.xlu0 %v1062, 64
    %v1065 = vpop.permute.xlu0 %1064
    %1067 = vst.msk [vmem:[#allocation3 + $0x8] sm:$0x30] %vm552, %v1065
    %1068 = vrot.lane.b32.xlu0 %v1062, 32
    %v1069 = vpop.permute.xlu0 %1068
    %1071 = vst.msk [vmem:[#allocation4 - $0x2] sm:$0x30] %vm552, %v1069
    %v1072 = vrot.slane %v944, 6
    %v1074 = vsel %vm813, %v1065, %v1072
    %1076 = vrot.lane.b32.xlu0 %v1060, 64
    %v1077 = vpop.permute.xlu0 %1076
    %v1080 = vsel %vm813, %v1077, %v1050
    %v1081 = vld [vmem:[#allocation2 + $0x10] sm:$0xc0]
    %v1082 = vld [vmem:[#allocation2 + $0x18] sm:$0xc0]
    %v1084 = vrot.slane %v1074, 4
    %v1085 = vsel %vm190, %v1084, 0
    %1087 = vmatprep.subr.mxu0 %v171
    %1088 = vmatpush1.msra.mxu0 %v170
    %1089 = vmatprep.subr.mxu0 %v173
    %1090 = vmatpush1.msra.mxu0 %v172
    %1091 = vmatprep.subr.mxu0 %v175
    %1092 = vmatpush1.msra.mxu0 %v174
    %1093 = vmatprep.subr.mxu0 %v177
    %1094 = vmatpush1.msra.mxu0 %v176
    %1095 = vmatprep.subr.mxu0 %v179
    %1096 = vmatpush1.msra.mxu0 %v178
    %1097 = vmatprep.subr.mxu0 %v181
    %1098 = vmatpush1.msra.mxu0 %v180
    %1099 = vmatprep.subr.mxu0 %v183
    %1100 = vmatpush1.msra.mxu0 %v182
    %1101 = vmatprep.subr.mxu0 %v185
    %1102 = vmatpush1.msra.mxu0 %v184
    %1103 = vmatprep.subr.mxu0 0.0
    %1104 = vmatpush1.msra.mxu0 0.0
    %1105 = vmatprep.subr.mxu0 0.0
    %1106 = vmatpush1.msra.mxu0 0.0
    %1107 = vmatprep.subr.mxu0 0.0
    %1108 = vmatpush1.msra.mxu0 0.0
    %1109 = vmatprep.subr.mxu0 0.0
    %1110 = vmatpush1.msra.mxu0 0.0
    %1111 = vmatprep.subr.mxu0 0.0
    %1112 = vmatpush1.msra.mxu0 0.0
    %1113 = vmatprep.subr.mxu0 0.0
    %1114 = vmatpush1.msra.mxu0 0.0
    %1115 = vmatprep.subr.mxu0 0.0
    %1116 = vmatpush1.msra.mxu0 0.0
    %1117 = vmatprep.subr.mxu0 0.0
    %1118 = vmatpush1.msra.mxu0 0.0
    %1119 = vmatprep.subr.mxu0 0.0
    %1120 = vmatpush1.msra.mxu0 0.0
    %1121 = vmatprep.subr.mxu0 0.0
    %1122 = vmatpush1.msra.mxu0 0.0
    %1123 = vmatprep.subr.mxu0 0.0
    %1124 = vmatpush1.msra.mxu0 0.0
    %1125 = vmatprep.subr.mxu0 0.0
    %1126 = vmatpush1.msra.mxu0 0.0
    %1127 = vmatprep.subr.mxu0 0.0
    %1128 = vmatpush1.msra.mxu0 0.0
    %1129 = vmatprep.subr.mxu0 0.0
    %1130 = vmatpush1.msra.mxu0 0.0
    %1131 = vmatprep.subr.mxu0 0.0
    %1132 = vmatpush1.msra.mxu0 0.0
    %1133 = vmatprep.subr.mxu0 0.0
    %1134 = vmatpush1.msra.mxu0 0.0
    %1135 = vmatprep.subr.mxu0 0.0
    %1136 = vmatpush1.msra.mxu0 0.0
    %1137 = vmatprep.subr.mxu0 0.0
    %1138 = vmatpush1.msra.mxu0 0.0
    %1139 = vmatprep.subr.mxu0 0.0
    %1140 = vmatpush1.msra.mxu0 0.0
    %1141 = vmatprep.subr.mxu0 0.0
    %1142 = vmatpush1.msra.mxu0 0.0
    %1143 = vmatprep.subr.mxu0 0.0
    %1144 = vmatpush1.msra.mxu0 0.0
    %1145 = vmatprep.subr.mxu0 0.0
    %1146 = vmatpush1.msra.mxu0 0.0
    %1147 = vmatprep.subr.mxu0 0.0
    %1148 = vmatpush1.msra.mxu0 0.0
    %1149 = vmatprep.subr.mxu0 0.0
    %1150 = vmatpush1.msra.mxu0 0.0
    %1151 = vmatprep.mubr.f32.mxu0 0.0
    %1152 = vmatmul.mubr.f32.gmra.mrb[0].mxu0 %v1085
    %v1153 = vpop.f32.mrb[0].mxu0
    %v1154 = vadd.f32 0.0, %v1153
    %v1155 = vpop.f32.mrb[0].mxu0
    %v1156 = vadd.f32 0.0, %v1155
    %1157 = vdwg.mxu0
    %v1160 = vrot.slane %v1154, 2
    %v1161 = vrot.slane %v1156, 2
    %v1164 = vadd.f32 %v1081, %v1160
    %v1165 = vadd.f32 %v1082, %v1161
    %v1166 = vxor.u32 %v1164, 2147483648
    %v1167 = vxor.u32 %v1165, 2147483648
    %v1168 = vmul.f32 %v1166, 1.442695
    %v1169 = vpow.pop %v1168
    %v1170 = vmul.f32 %v1167, 1.442695
    %v1171 = vpow.pop %v1170
    %v1172 = vadd.f32 %v1169, 1.0
    %v1173 = vadd.f32 %v1171, 1.0
    %v1174 = vrcp.pop %v1172
    %v1175 = vmul.f32 1.0, %v1174
    %v1176 = vrcp.pop %v1173
    %v1177 = vmul.f32 1.0, %v1176
    %v1178 = vtanh.pop %v1165
    %v1180 = vrot.slane %v1080, 6
    %1181 = vrot.lane.b32.xlu0 %v1180, 64
    %v1182 = vpop.permute.xlu0 %1181
    %v1184 = vmul.f32 %v1175, %v1182
    %v1185 = vmul.f32 %v1175, %v1178
    %1187 = vrot.lane.b32.xlu0 %v1185, 64
    %v1188 = vpop.permute.xlu0 %1187
    %v1190 = vadd.f32 %v1184, %v1188
    %v1191 = vtanh.pop %v1190
    %v1192 = vmul.f32 %v1177, %v1191
    %1194 = vrot.lane.b32.xlu0 %v1192, 64
    %v1195 = vpop.permute.xlu0 %1194
    %1197 = vst.msk [vmem:[#allocation3 + $0x8] sm:$0xc0] %vm683, %v1195
    %1198 = vrot.lane.b32.xlu0 %v1192, 32
    %v1199 = vpop.permute.xlu0 %1198
    %1201 = vst.msk [vmem:[#allocation4 - $0x6] sm:$0xc0] %vm683, %v1199
    %v1202 = vld [vmem:[#allocation3] sm:$0xff]
    %v1203 = vld [vmem:[#allocation3 + $0x8] sm:$0xff]
    %v1204 = vld [vmem:[%s5] sm:$0xff]
    %v1205 = vld [vmem:[%s5 + $0x8] sm:$0xff]
    %v1206 = vld [vmem:[%s5 + $0x10] sm:$0xff]
    %v1207 = vld [vmem:[%s5 + $0x18] sm:$0xff]
    %v1208 = vld [vmem:[#allocation4] sm:$0xff]
    %v1209 = vld [vmem:[#allocation4 + $0x8] sm:$0xff]
    %v1210 = vld [vmem:[%s6] sm:$0xff]
    %v1211 = vld [vmem:[%s6 + $0x8] sm:$0xff]
    %v1212 = vld [vmem:[%s6 + $0x10] sm:$0xff]
    %v1213 = vld [vmem:[%s6 + $0x18] sm:$0xff]
    %v1215 = vsel %vm82, %v1208, 0
    %v1218 = vsel %vm82, %v1209, 0
    %1220 = vmatprep.subr.mxu0 0.0
    %1221 = vmatpush1.msra.mxu0 %v1210
    %1222 = vmatprep.subr.mxu0 0.0
    %1223 = vmatpush1.msra.mxu0 %v1211
    %1224 = vmatprep.subr.mxu0 0.0
    %1225 = vmatpush1.msra.mxu0 %v1212
    %1226 = vmatprep.subr.mxu0 0.0
    %1227 = vmatpush1.msra.mxu0 %v1213
    %1228 = vmatprep.subr.mxu0 0.0
    %1229 = vmatpush1.msra.mxu0 0.0
    %1230 = vmatprep.subr.mxu0 0.0
    %1231 = vmatpush1.msra.mxu0 0.0
    %1232 = vmatprep.subr.mxu0 0.0
    %1233 = vmatpush1.msra.mxu0 0.0
    %1234 = vmatprep.subr.mxu0 0.0
    %1235 = vmatpush1.msra.mxu0 0.0
    %1236 = vmatprep.subr.mxu0 0.0
    %1237 = vmatpush1.msra.mxu0 0.0
    %1238 = vmatprep.subr.mxu0 0.0
    %1239 = vmatpush1.msra.mxu0 0.0
    %1240 = vmatprep.subr.mxu0 0.0
    %1241 = vmatpush1.msra.mxu0 0.0
    %1242 = vmatprep.subr.mxu0 0.0
    %1243 = vmatpush1.msra.mxu0 0.0
    %1244 = vmatprep.subr.mxu0 0.0
    %1245 = vmatpush1.msra.mxu0 0.0
    %1246 = vmatprep.subr.mxu0 0.0
    %1247 = vmatpush1.msra.mxu0 0.0
    %1248 = vmatprep.subr.mxu0 0.0
    %1249 = vmatpush1.msra.mxu0 0.0
    %1250 = vmatprep.subr.mxu0 0.0
    %1251 = vmatpush1.msra.mxu0 0.0
    %1252 = vmatprep.subr.mxu0 0.0
    %1253 = vmatpush1.msra.mxu0 0.0
    %1254 = vmatprep.subr.mxu0 0.0
    %1255 = vmatpush1.msra.mxu0 0.0
    %1256 = vmatprep.subr.mxu0 0.0
    %1257 = vmatpush1.msra.mxu0 0.0
    %1258 = vmatprep.subr.mxu0 0.0
    %1259 = vmatpush1.msra.mxu0 0.0
    %1260 = vmatprep.subr.mxu0 0.0
    %1261 = vmatpush1.msra.mxu0 0.0
    %1262 = vmatprep.subr.mxu0 0.0
    %1263 = vmatpush1.msra.mxu0 0.0
    %1264 = vmatprep.subr.mxu0 0.0
    %1265 = vmatpush1.msra.mxu0 0.0
    %1266 = vmatprep.subr.mxu0 0.0
    %1267 = vmatpush1.msra.mxu0 0.0
    %1268 = vmatprep.subr.mxu0 0.0
    %1269 = vmatpush1.msra.mxu0 0.0
    %1270 = vmatprep.subr.mxu0 0.0
    %1271 = vmatpush1.msra.mxu0 0.0
    %1272 = vmatprep.subr.mxu0 0.0
    %1273 = vmatpush1.msra.mxu0 0.0
    %1274 = vmatprep.subr.mxu0 0.0
    %1275 = vmatpush1.msra.mxu0 0.0
    %1276 = vmatprep.subr.mxu0 0.0
    %1277 = vmatpush1.msra.mxu0 0.0
    %1278 = vmatprep.subr.mxu0 0.0
    %1279 = vmatpush1.msra.mxu0 0.0
    %1280 = vmatprep.subr.mxu0 0.0
    %1281 = vmatpush1.msra.mxu0 0.0
    %1282 = vmatprep.subr.mxu0 0.0
    %1283 = vmatpush1.msra.mxu0 0.0
    %1284 = vmatprep.mubr.f32.mxu0 0.0
    %1285 = vmatmul.mubr.f32.gmra.mrb[0].mxu0 %v1215
    %v1286 = vpop.f32.mrb[0].mxu0
    %v1287 = vadd.f32 0.0, %v1286
    %v1288 = vpop.f32.mrb[0].mxu0
    %1289 = vmatprep.mubr.f32.mxu0 0.0
    %1290 = vmatmul.mubr.f32.gmra.mrb[0].mxu0 %v1218
    %v1291 = vpop.f32.mrb[0].mxu0
    %v1292 = vadd.f32 0.0, %v1291
    %v1293 = vpop.f32.mrb[0].mxu0
    %1294 = vdwg.mxu0
    %v1296 = vsel %vm82, %v1202, 0
    %v1299 = vsel %vm82, %v1203, 0
    %1301 = vmatprep.subr.mxu0 0.0
    %1302 = vmatpush1.msra.mxu0 %v1204
    %1303 = vmatprep.subr.mxu0 0.0
    %1304 = vmatpush1.msra.mxu0 %v1205
    %1305 = vmatprep.subr.mxu0 0.0
    %1306 = vmatpush1.msra.mxu0 %v1206
    %1307 = vmatprep.subr.mxu0 0.0
    %1308 = vmatpush1.msra.mxu0 %v1207
    %1309 = vmatprep.subr.mxu0 0.0
    %1310 = vmatpush1.msra.mxu0 0.0
    %1311 = vmatprep.subr.mxu0 0.0
    %1312 = vmatpush1.msra.mxu0 0.0
    %1313 = vmatprep.subr.mxu0 0.0
    %1314 = vmatpush1.msra.mxu0 0.0
    %1315 = vmatprep.subr.mxu0 0.0
    %1316 = vmatpush1.msra.mxu0 0.0
    %1317 = vmatprep.subr.mxu0 0.0
    %1318 = vmatpush1.msra.mxu0 0.0
    %1319 = vmatprep.subr.mxu0 0.0
    %1320 = vmatpush1.msra.mxu0 0.0
    %1321 = vmatprep.subr.mxu0 0.0
    %1322 = vmatpush1.msra.mxu0 0.0
    %1323 = vmatprep.subr.mxu0 0.0
    %1324 = vmatpush1.msra.mxu0 0.0
    %1325 = vmatprep.subr.mxu0 0.0
    %1326 = vmatpush1.msra.mxu0 0.0
    %1327 = vmatprep.subr.mxu0 0.0
    %1328 = vmatpush1.msra.mxu0 0.0
    %1329 = vmatprep.subr.mxu0 0.0
    %1330 = vmatpush1.msra.mxu0 0.0
    %1331 = vmatprep.subr.mxu0 0.0
    %1332 = vmatpush1.msra.mxu0 0.0
    %1333 = vmatprep.subr.mxu0 0.0
    %1334 = vmatpush1.msra.mxu0 0.0
    %1335 = vmatprep.subr.mxu0 0.0
    %1336 = vmatpush1.msra.mxu0 0.0
    %1337 = vmatprep.subr.mxu0 0.0
    %1338 = vmatpush1.msra.mxu0 0.0
    %1339 = vmatprep.subr.mxu0 0.0
    %1340 = vmatpush1.msra.mxu0 0.0
    %1341 = vmatprep.subr.mxu0 0.0
    %1342 = vmatpush1.msra.mxu0 0.0
    %1343 = vmatprep.subr.mxu0 0.0
    %1344 = vmatpush1.msra.mxu0 0.0
    %1345 = vmatprep.subr.mxu0 0.0
    %1346 = vmatpush1.msra.mxu0 0.0
    %1347 = vmatprep.subr.mxu0 0.0
    %1348 = vmatpush1.msra.mxu0 0.0
    %1349 = vmatprep.subr.mxu0 0.0
    %1350 = vmatpush1.msra.mxu0 0.0
    %1351 = vmatprep.subr.mxu0 0.0
    %1352 = vmatpush1.msra.mxu0 0.0
    %1353 = vmatprep.subr.mxu0 0.0
    %1354 = vmatpush1.msra.mxu0 0.0
    %1355 = vmatprep.subr.mxu0 0.0
    %1356 = vmatpush1.msra.mxu0 0.0
    %1357 = vmatprep.subr.mxu0 0.0
    %1358 = vmatpush1.msra.mxu0 0.0
    %1359 = vmatprep.subr.mxu0 0.0
    %1360 = vmatpush1.msra.mxu0 0.0
    %1361 = vmatprep.subr.mxu0 0.0
    %1362 = vmatpush1.msra.mxu0 0.0
    %1363 = vmatprep.subr.mxu0 0.0
    %1364 = vmatpush1.msra.mxu0 0.0
    %1365 = vmatprep.mubr.f32.mxu0 0.0
    %1366 = vmatmul.mubr.f32.gmra.mrb[0].mxu0 %v1296
    %v1367 = vpop.f32.mrb[0].mxu0
    %v1368 = vadd.f32 %v1287, %v1367
    %v1369 = vpop.f32.mrb[0].mxu0
    %1370 = vmatprep.mubr.f32.mxu0 0.0
    %1371 = vmatmul.mubr.f32.gmra.mrb[0].mxu0 %v1299
    %v1372 = vpop.f32.mrb[0].mxu0
    %v1373 = vadd.f32 %v1292, %v1372
    %v1374 = vpop.f32.mrb[0].mxu0
    %1375 = vdwg.mxu0
    %v1376 = vsub.f32 %v186, 1.0
    %v1377 = vsub.f32 %v187, 1.0
    %v1378 = vmul.f32 %v1376, 1e+30
    %v1379 = vmul.f32 %v1377, 1e+30
    %1381 = vset.pattern.permute.xlu0 0
    %1382 = vperm.xlu0 %1381, %v1378
    %v1383 = vpop.permute.xlu0 %1382
    %1386 = vset.pattern.permute.xlu0 0
    %1387 = vperm.xlu0 %1386, %v1379
    %v1388 = vpop.permute.xlu0 %1387
    %v1390 = vadd.f32 %v1368, %v1383
    %v1391 = vadd.f32 %v1373, %v1388
    %v1393 = vrot.slane %v1390, 2
    %v1395 = vmax.f32 %v1390, %v1393
    %v1396 = vrot.slane %v1390, 4
    %v1398 = vmax.f32 %v1395, %v1396
    %v1399 = vrot.slane %v1390, 6
    %v1401 = vmax.f32 %v1398, %v1399
    %v1402 = vmax.f32 %v1401, %v1391
    %v1404 = vrot.slane %v1391, 2
    %v1406 = vmax.f32 %v1402, %v1404
    %v1407 = vrot.slane %v1391, 4
    %v1409 = vmax.f32 %v1406, %v1407
    %v1410 = vrot.slane %v1391, 6
    %v1412 = vmax.f32 %v1409, %v1410
    %v1413 = vsub.f32 %v1390, %v1412
    %v1414 = vmul.f32 %v1413, 1.442695
    %v1415 = vpow.pop %v1414
    %v1416 = vadd.f32 %v1415, 0.0
    %1418 = vset.pattern.permute.xlu0 5
    %1419 = vperm.xlu0 %1418, %v1368
    %v1420 = vpop.permute.xlu0 %1419
    %v1422 = vmul.f32 %v1415, %v1420
    %v1423 = vadd.f32 %v1422, 0.0
    %v1425 = vrot.slane %v1412, 6
    %v1427 = vsub.f32 %v1390, %v1425
    %v1428 = vmul.f32 %v1427, 1.442695
    %v1429 = vpow.pop %v1428
    %v1431 = vrot.slane %v1429, 2
    %v1433 = vadd.f32 %v1416, %v1431
    %v1434 = vmul.f32 %v1429, %v1420
    %v1436 = vrot.slane %v1434, 2
    %v1438 = vadd.f32 %v1423, %v1436
    %v1439 = vrot.slane %v1412, 4
    %v1441 = vsub.f32 %v1390, %v1439
    %v1442 = vmul.f32 %v1441, 1.442695
    %v1443 = vpow.pop %v1442
    %v1445 = vrot.slane %v1443, 4
    %v1447 = vadd.f32 %v1433, %v1445
    %v1448 = vmul.f32 %v1443, %v1420
    %v1450 = vrot.slane %v1448, 4
    %v1452 = vadd.f32 %v1438, %v1450
    %v1453 = vrot.slane %v1412, 2
    %v1455 = vsub.f32 %v1390, %v1453
    %v1456 = vmul.f32 %v1455, 1.442695
    %v1457 = vpow.pop %v1456
    %v1459 = vrot.slane %v1457, 6
    %v1461 = vadd.f32 %v1447, %v1459
    %v1462 = vmul.f32 %v1457, %v1420
    %v1464 = vrot.slane %v1462, 6
    %v1466 = vadd.f32 %v1452, %v1464
    %v1467 = vsub.f32 %v1391, %v1412
    %v1468 = vmul.f32 %v1467, 1.442695
    %v1469 = vpow.pop %v1468
    %v1470 = vadd.f32 %v1461, %v1469
    %1472 = vset.pattern.permute.xlu0 5
    %1473 = vperm.xlu0 %1472, %v1373
    %v1474 = vpop.permute.xlu0 %1473
    %v1476 = vmul.f32 %v1469, %v1474
    %v1477 = vadd.f32 %v1466, %v1476
    %v1478 = vsub.f32 %v1391, %v1425
    %v1479 = vmul.f32 %v1478, 1.442695
    %v1480 = vpow.pop %v1479
    %v1482 = vrot.slane %v1480, 2
    %v1484 = vadd.f32 %v1470, %v1482
    %v1485 = vmul.f32 %v1480, %v1474
    %v1487 = vrot.slane %v1485, 2
    %v1489 = vadd.f32 %v1477, %v1487
    %v1490 = vsub.f32 %v1391, %v1439
    %v1491 = vmul.f32 %v1490, 1.442695
    %v1492 = vpow.pop %v1491
    %v1494 = vrot.slane %v1492, 4
    %v1496 = vadd.f32 %v1484, %v1494
    %v1497 = vmul.f32 %v1492, %v1474
    %v1499 = vrot.slane %v1497, 4
    %v1501 = vadd.f32 %v1489, %v1499
    %v1502 = vsub.f32 %v1391, %v1453
    %v1503 = vmul.f32 %v1502, 1.442695
    %v1504 = vpow.pop %v1503
    %v1506 = vrot.slane %v1504, 6
    %v1508 = vadd.f32 %v1496, %v1506
    %v1509 = vmul.f32 %v1504, %v1474
    %v1511 = vrot.slane %v1509, 6
    %v1513 = vadd.f32 %v1501, %v1511
    %v1514 = vrcp.pop %v1508
    %v1515 = vmul.f32 %v1513, %v1514
    %v1516 = vld [vmem:[#allocation5] sm:$0x1]
    %v1518 = vlaneseq
    %v1519 = vshrl.u32 %v1518, 7
    %v1520 = vsub.s32 0, %v1519
    %v1521 = vrot.slane %v1516, %v1520
    %1522 = vset.pattern.permute.xlu0 0
    %1523 = vperm.xlu0 %1522, %v1521
    %v1524 = vpop.permute.xlu0 %1523
    %v1526 = vadd.f32 %v1515, %v1524
    %vm1527 = vcmask 33792
    %v1528 = vsel %vm1527, %v1526, -inf
    %1529 = vmax.xlane.f32.xlu0 %v1528
    %v1530 = vpop.xlane.xlu0 %1529
    %v1531 = vsub.f32 %v1526, %v1530
    %v1532 = vmul.f32 %v1531, 1.442695
    %v1533 = vpow.pop %v1532
    %v1534 = vsel %vm1527, %v1533, 0.0
    %1535 = vadd.xlane.f32.xlu0 %v1534
    %v1536 = vpop.xlane.xlu0 %1535
    %v1537 = vlog2.pop %v1536
    %v1538 = vmul.f32 %v1537, 0.6931472
    %v1539 = vadd.f32 %v1530, %v1538
    %v1540 = vsub.f32 %v1526, %v1539
    %1541 = vst.msk [vmem:[#allocation11] sm:$0x3] %vm1527, %v1540
    // Predicated region
    $region42: #{tpu_custom_call.1} parent=1 // pred_check
      _
    $region43: #{tpu_custom_call.1} parent=1 // pred_check_branch
      %1543 = sbr.rel (0) target = $region45
    $region44: #{tpu_custom_call.1} parent=1 // pred_region
      %s1545 = ssub.s32 32, 32
      %1546 = vsyncadd [#allocation8], %s1545
      %s1548 = sshll.u32 [#allocation11], 4
      %s1549 = int_to_ptr.vmem [resolvable:$true] %s1548
      %1551 = dma.vmem_to_hbm [thread:$0]  %s1549, 32, %s8, [#allocation8]
    $region45: #{tpu_custom_call.1} parent=1 // pred_fallthru
      _
    // Predicated region
    $region46: #{tpu_custom_call.1} parent=1 // pred_check
      _
    $region47: #{tpu_custom_call.1} parent=1 // pred_check_branch
      %1553 = sbr.rel (0) target = $region49
    $region48: #{tpu_custom_call.1} parent=1 // pred_region
      %1554 = dma.done [#allocation8], 32
    $region49: #{tpu_custom_call.1} parent=1 // pred_fallthru
      _
    %1555 = vsyncpa [#allocation7], 1
    %1556 = vsyncpa [#allocation10], 1
    %1557 = vsyncpa [#allocation8], 1

</llo_original>
